<compile_context>
chip_gen: v5e
topology: v5e:2x2
jax: 0.10.0
libtpu: 0.0.40
codegen_flags: <defaults>
</compile_context>

<pallas_src>
import jax
import jax.numpy as jnp
from jax.experimental import pallas as pl
from jax.experimental.pallas import tpu as pltpu

F32 = jnp.float32
BF16 = jnp.bfloat16


def _gru_h0(cls_embed, params):
    """GRU step on '[CLS]' with zero initial hidden (h_prev=0 => gh = b_hh).

    Pure JAX, hoisted out of the kernel: the result is identical for every
    document, so there is no reason to redo the dot + sigmoids per grid step.
    """
    H = params["whh"].shape[0]
    gx = jnp.dot(cls_embed.astype(BF16), params["wih"].astype(BF16),
                 preferred_element_type=F32) + params["bih"]
    bhh = params["bhh"]
    r = jax.nn.sigmoid(gx[:, :H] + bhh[:, :H])
    z = jax.nn.sigmoid(gx[:, H:2 * H] + bhh[:, H:2 * H])
    n = jnp.tanh(gx[:, 2 * H:] + r * bhh[:, 2 * H:])
    return (1.0 - z) * n                                        # (1, H) f32


def _kernel(tok_ref, mask_ref, sel_ref, h0_ref,
            wg_ref, bg_ref, al_ref, ar_ref,
            wih_ref, whh_ref, bih_ref, bhh_ref,
            whead_ref, bhead_ref, out_ref):
    Bt, S, E = tok_ref.shape
    C = sel_ref.shape[1]
    H = whh_ref.shape[0]
    F = whead_ref.shape[1]

    t_bf = tok_ref[...]                                  # (Bt,S,E) bf16
    maskf = mask_ref[...].astype(F32)                    # (Bt,S,S) int8 -> f32
    sel = sel_ref[...].astype(F32)                       # (Bt,C,S) int8 -> f32 one-hot
    wgT = wg_ref[...]                                    # (E,E)  bf16 == W_g.T
    bg = bg_ref[...]                                     # (1,E)  f32
    aL = al_ref[...]                                     # (1,E)  alpha_left
    aR = ar_ref[...]                                     # (1,E)  alpha_right

    # ---------------- GAT over dependency children (batched) -----------------
    # One dense bf16 MXU matmul with M = Bt*S rows, f32 accumulation.
    wg_t = jnp.dot(t_bf.reshape(Bt * S, E), wgT,
                   preferred_element_type=F32).reshape(Bt, S, E) + bg
    score_l = jnp.sum(wg_t * aL, axis=-1, keepdims=True)         # (Bt,S,1)
    score_r = jnp.sum(wg_t * aR, axis=-1)[:, None, :]            # (Bt,1,S)
    scores = score_l + score_r                                   # (Bt,S,S)
    scores = jnp.where(scores >= 0, scores, 0.2 * scores)        # leaky_relu(0.2)
    # Keep the mask/fill path in f32: a -1e30 fill is not bf16-safe.
    masked = jnp.where(maskf > 0, scores, jnp.float32(-1e30))
    mrow = jnp.max(masked, axis=-1, keepdims=True)
    expd = jnp.exp(masked - mrow) * maskf
    denom = jnp.sum(expd, axis=-1, keepdims=True)
    attn = expd * pl.reciprocal(jnp.maximum(denom, 1e-30), approx=True)
    has_child = (jnp.sum(maskf, axis=-1, keepdims=True) > 0).astype(F32)
    ctx = jnp.einsum('bij,bje->bie', attn.astype(BF16), wg_t.astype(BF16),
                     preferred_element_type=F32)                 # (Bt,S,E)
    new_t = t_bf.astype(F32) + has_child * ctx                   # t_i' (t_i if no children)

    # -------- GRU over the packed clue tokens (only C = max_clues steps) ------
    wih = wih_ref[...]        # (E,3H) bf16  fused [W_ir|W_iz|W_in].T
    whh = whh_ref[...]        # (H,3H) bf16  fused [W_hr|W_hz|W_hn].T
    bih = bih_ref[...]        # (1,3H) f32
    bhh = bhh_ref[...]        # (1,3H) f32

    # Exact one-hot gather of the clue rows (f32 -> no extra rounding vs the
    # reference); padded clue slots are all-zero rows.
    t_clue = jnp.einsum('bcs,bse->bce', sel, new_t,
                        preferred_element_type=F32)               # (Bt,C,E)
    valid = jnp.sum(sel, axis=-1)                                 # (Bt,C) in {0,1}
    # Input projection hoisted out of the serial loop (bf16 MXU, small M so the
    # 3-D einsum is fine here; no unaligned reshape needed).
    gx_all = jnp.einsum('bce,ek->bck', t_clue.astype(BF16), wih,
                        preferred_element_type=F32) + bih         # (Bt,C,3H)

    bhh_b = jnp.broadcast_to(bhh, (Bt, 3 * H))                    # hoisted broadcast
    h = jnp.broadcast_to(h0_ref[...], (Bt, H))                    # [CLS] step (host)

    # C is small & static -> unrolled Python loop; each step is one bf16
    # (Bt,H)@(H,3H) matmul on the recurrence critical path.
    # TODO(synk): for production C, transpose gx_all/valid once so the step axis
    # is leading (avoids the per-step sublane slice) and use lax.fori_loop(unroll=2-4).
    for c in range(C):
        gx = gx_all[:, c, :]                                      # (Bt,3H)
        gh = jnp.dot(h.astype(BF16), whh,
                     preferred_element_type=F32) + bhh_b          # (Bt,3H)
        r = jax.nn.sigmoid(gx[:, :H] + gh[:, :H])
        z = jax.nn.sigmoid(gx[:, H:2 * H] + gh[:, H:2 * H])
        n = jnp.tanh(gx[:, 2 * H:] + r * gh[:, 2 * H:])
        h_new = (1.0 - z) * n + z * h
        h = jnp.where(valid[:, c:c + 1] > 0, h_new, h)            # carry on padded slots

    # ---------------------- fused cause|effect heads --------------------------
    whead = whead_ref[...]                                        # (E+H,F) bf16
    bhead = bhead_ref[...]                                        # (1,F)   f32
    out_tok = jnp.dot(new_t.reshape(Bt * S, E).astype(BF16), whead[:E],
                      preferred_element_type=F32).reshape(Bt, S, F)
    out_h = jnp.dot(h.astype(BF16), whead[E:],
                    preferred_element_type=F32) + bhead           # (Bt,F)
    out_ref[...] = (out_tok + out_h[:, None, :]).astype(out_ref.dtype)


def clue_causality_forward(tok_embed, cls_embed, children_mask, is_clue, params,
                           block_b=4, max_clues=None,
                           vmem_limit_bytes=32 * 1024 * 1024):
    """Run the Pallas kernel over blocks of `block_b` documents.

    Production sizing: pick block_b so block_b*S >= 256 rows (>=128 on v5e), keep
    >= 2 (ideally even) grid steps for v7x's two TensorCores, and budget ~5 live
    f32 (block_b, S, S) GAT temporaries against VMEM (64 MiB on v7x, 128 MiB on
    v5e/v6e) -- raise vmem_limit_bytes accordingly on v6e, lower block_b on v7x.
    NOTE: max_clues is a static trip count (derived from is_clue here); pass it
    explicitly when calling under jit.
    """
    B, S, E = tok_embed.shape
    H = params["whh"].shape[0]
    F = params["whead"].shape[1]
    block_b = max(1, min(block_b, B))

    if max_clues is None:
        max_clues = int(jnp.max(jnp.sum((is_clue > 0).astype(jnp.int32), axis=-1)))
    max_clues = max(int(max_clues), 1)

    # Pad the doc batch to a multiple of block_b (padded docs: no children, no
    # clues; their rows are sliced off below).
    Bp = ((B + block_b - 1) // block_b) * block_b
    if Bp != B:
        pad = Bp - B
        tok_embed = jnp.pad(tok_embed, ((0, pad), (0, 0), (0, 0)))
        children_mask = jnp.pad(children_mask, ((0, pad), (0, 0), (0, 0)))
        is_clue = jnp.pad(is_clue, ((0, pad), (0, 0)))

    # int8 adjacency / clue-select inputs: 4x less HBM->VMEM DMA than f32.
    mask_i8 = (children_mask > 0).astype(jnp.int8)                       # (Bp,S,S)
    clue_b = is_clue > 0
    ranks = jnp.cumsum(clue_b.astype(jnp.int32), axis=-1) - 1            # (Bp,S)
    c_idx = jnp.arange(max_clues, dtype=jnp.int32)
    sel_i8 = (clue_b[:, None, :]
              & (ranks[:, None, :] == c_idx[None, :, None])).astype(jnp.int8)  # (Bp,C,S)

    # '[CLS]' GRU step is document-independent -> once on the host.
    h0 = _gru_h0(cls_embed, params)                                      # (1,H) f32

    # Constant index_maps: Pallas only re-issues a DMA when the mapped block index
    # changes, so the weights are fetched once.  (For BERT-scale E, additionally
    # use pipeline_mode=pl.Buffered(1) to drop the second VMEM buffer.)
    def const_spec(shape):
        n = len(shape)
        return pl.BlockSpec(shape, lambda b, _n=n: (0,) * _n)

    grid_spec = pltpu.PrefetchScalarGridSpec(
        num_scalar_prefetch=0,
        grid=(Bp // block_b,),
        in_specs=[
            pl.BlockSpec((block_b, S, E), lambda b: (b, 0, 0)),          # tok (bf16)
            pl.BlockSpec((block_b, S, S), lambda b: (b, 0, 0)),          # children mask (int8)
            pl.BlockSpec((block_b, max_clues, S), lambda b: (b, 0, 0)),  # clue select (int8)
            const_spec((1, H)),                                          # h0 after [CLS]
            const_spec((E, E)), const_spec((1, E)),                      # W_g.T (bf16), b_g
            const_spec((1, E)), const_spec((1, E)),                      # alpha_left / right
            const_spec((E, 3 * H)), const_spec((H, 3 * H)),              # GRU W_ih.T | W_hh.T (bf16)
            const_spec((1, 3 * H)), const_spec((1, 3 * H)),              # GRU b_ih | b_hh
            const_spec((E + H, F)), const_spec((1, F)),                  # fused cause|effect head
        ],
        out_specs=pl.BlockSpec((block_b, S, F), lambda b: (b, 0, 0)),
    )
    out = pl.pallas_call(
        _kernel,
        out_shape=jax.ShapeDtypeStruct((Bp, S, F), jnp.float32),
        grid_spec=grid_spec,
        compiler_params=pltpu.CompilerParams(
            dimension_semantics=("parallel",),
            vmem_limit_bytes=vmem_limit_bytes),
    )(tok_embed, mask_i8, sel_i8, h0,
      params["wgT"], params["bg"], params["aL"], params["aR"],
      params["wih"], params["whh"], params["bih"], params["bhh"],
      params["whead"], params["bhead"])
    out = out[:B]
    return out[..., :F // 2], out[..., F // 2:]


def reference(tok_embed, cls_embed, children_mask, is_clue, params):
    """Pure-JAX per-document reference.

    Mirrors the kernel's mixed-precision recipe (bf16 matmul operands, f32
    accumulation / elementwise math) so the comparison tolerance stays tight and
    still catches structural bugs.
    """
    B, S, E = tok_embed.shape
    H = params["whh"].shape[0]

    def mm(a, b):
        return jnp.dot(a.astype(BF16), b.astype(BF16), preferred_element_type=F32)

    h0 = _gru_h0(cls_embed, params)
    oc_all, oe_all = [], []
    for b in range(B):
        t = tok_embed[b]
        mask = (children_mask[b] > 0).astype(F32)
        clue = is_clue[b]

        wg_t = mm(t, params["wgT"]) + params["bg"]
        sl = jnp.sum(wg_t * params["aL"], axis=-1, keepdims=True)
        sr = jnp.sum(wg_t * params["aR"], axis=-1)[None, :]
        sc = sl + sr
        sc = jnp.where(sc >= 0, sc, 0.2 * sc)
        masked = jnp.where(mask > 0, sc, -1e30)
        e = jnp.exp(masked - masked.max(-1, keepdims=True)) * mask
        attn = e / jnp.maximum(e.sum(-1, keepdims=True), 1e-30)
        has_child = (mask.sum(-1, keepdims=True) > 0).astype(F32)
        new_t = t.astype(F32) + has_child * mm(attn, wg_t)

        h = h0
        for s in range(S):
            gx = mm(new_t[s:s + 1], params["wih"]) + params["bih"]
            gh = mm(h, params["whh"]) + params["bhh"]
            r = jax.nn.sigmoid(gx[:, :H] + gh[:, :H])
            z = jax.nn.sigmoid(gx[:, H:2 * H] + gh[:, H:2 * H])
            n = jnp.tanh(gx[:, 2 * H:] + r * gh[:, 2 * H:])
            h_new = (1.0 - z) * n + z * h
            h = jnp.where(clue[s] > 0, h_new, h)

        out = mm(new_t, params["whead"][:E]) + (mm(h, params["whead"][E:]) + params["bhead"])
        oc_all.append(out[:, :3])
        oe_all.append(out[:, 3:])
    return jnp.stack(oc_all), jnp.stack(oe_all)


if __name__ == "__main__":
    # docs, tokens/doc, bert embed dim, GRU hidden (= E/2); block_b=4 -> 2 grid steps.
    B, S, E, H = 8, 8, 32, 16

    key = jax.random.PRNGKey(0)
    ks = jax.random.split(key, 14)

    # synthetic "BERT" embeddings (bf16) and dependency / clue structure
    tok_embed = jax.random.normal(ks[0], (B, S, E), F32).astype(BF16)
    cls_embed = jax.random.normal(ks[1], (1, E), F32).astype(BF16)
    child_p = jax.random.uniform(ks[2], (B, S, S))
    no_self = (jnp.eye(S)[None] < 0.5)
    children_mask = ((child_p < 0.3) & no_self).astype(F32)
    is_clue = (jax.random.uniform(ks[3], (B, S)) < 0.4).astype(F32)

    # deterministic parameters (shapes from the module's __init__, pre-fused;
    # matmul weights stored bf16, biases / alphas kept f32)
    params = dict(
        wgT=(jax.random.normal(ks[4], (E, E), F32) * 0.1).astype(BF16),        # W_g.T
        bg=jax.random.normal(ks[5], (1, E), F32) * 0.1,                        # W_g bias
        aL=jax.random.normal(ks[6], (1, E), F32),                              # alpha_left
        aR=jax.random.normal(ks[7], (1, E), F32),                              # alpha_right
        wih=(jax.random.normal(ks[8], (E, 3 * H), F32) * 0.1).astype(BF16),    # GRU [W_ir|W_iz|W_in].T
        whh=(jax.random.normal(ks[9], (H, 3 * H), F32) * 0.1).astype(BF16),    # GRU [W_hr|W_hz|W_hn].T
        bih=jax.random.normal(ks[10], (1, 3 * H), F32) * 0.1,
        bhh=jax.random.normal(ks[11], (1, 3 * H), F32) * 0.1,
        whead=(jax.random.normal(ks[12], (E + H, 6), F32) * 0.1).astype(BF16), # [W_cause.T|W_effect.T]
        bhead=jax.random.normal(ks[13], (1, 6), F32) * 0.1,
    )

    o_causes, o_effects = clue_causality_forward(
        tok_embed, cls_embed, children_mask, is_clue, params, block_b=4)
    jax.block_until_ready((o_causes, o_effects))

    oc_ref, oe_ref = reference(tok_embed, cls_embed, children_mask, is_clue, params)
    assert o_causes.shape == (B, S, 3) and o_effects.shape == (B, S, 3)
    # Tolerance covers the EUP approximate-reciprocal softmax and bf16 operand
    # rounding differences around it (both sides use bf16 matmul operands).
    assert jnp.allclose(o_causes, oc_ref, atol=5e-3, rtol=5e-3)
    assert jnp.allclose(o_effects, oe_ref, atol=5e-3, rtol=5e-3)

    print("KERNEL_OK")
</pallas_src>

<mosaic_0001>
module attributes {stable_mosaic.version = 11 : i64} {
  func.func @_kernel(%arg0: i32, %arg1: memref<4x8x32xbf16, #tpu.memory_space<vmem>>, %arg2: memref<4x8x8xi8, #tpu.memory_space<vmem>>, %arg3: memref<4x5x8xi8, #tpu.memory_space<vmem>>, %arg4: memref<1x16xf32, #tpu.memory_space<vmem>>, %arg5: memref<32x32xbf16, #tpu.memory_space<vmem>>, %arg6: memref<1x32xf32, #tpu.memory_space<vmem>>, %arg7: memref<1x32xf32, #tpu.memory_space<vmem>>, %arg8: memref<1x32xf32, #tpu.memory_space<vmem>>, %arg9: memref<32x48xbf16, #tpu.memory_space<vmem>>, %arg10: memref<16x48xbf16, #tpu.memory_space<vmem>>, %arg11: memref<1x48xf32, #tpu.memory_space<vmem>>, %arg12: memref<1x48xf32, #tpu.memory_space<vmem>>, %arg13: memref<48x6xbf16, #tpu.memory_space<vmem>>, %arg14: memref<1x6xf32, #tpu.memory_space<vmem>>, %arg15: memref<4x8x6xf32, #tpu.memory_space<vmem>>) attributes {dimension_semantics = [#tpu.dimension_semantics<parallel>], iteration_bounds = array<i64: 2>, scalar_prefetch = 0 : i64, scratch_operands = 0 : i64, tpu.core_type = #tpu.core_type<tc>, window_params = [{transform_indices = @transform_0, window_bounds = array<i64: 4, 8, 32>}, {transform_indices = @transform_1, window_bounds = array<i64: 4, 8, 8>}, {transform_indices = @transform_2, window_bounds = array<i64: 4, 5, 8>}, {pipeline_mode = #tpu.pipeline_mode<synchronous>, transform_indices = @transform_3, window_bounds = array<i64: 1, 16>}, {pipeline_mode = #tpu.pipeline_mode<synchronous>, transform_indices = @transform_4, window_bounds = array<i64: 32, 32>}, {pipeline_mode = #tpu.pipeline_mode<synchronous>, transform_indices = @transform_5, window_bounds = array<i64: 1, 32>}, {pipeline_mode = #tpu.pipeline_mode<synchronous>, transform_indices = @transform_6, window_bounds = array<i64: 1, 32>}, {pipeline_mode = #tpu.pipeline_mode<synchronous>, transform_indices = @transform_7, window_bounds = array<i64: 1, 32>}, {pipeline_mode = #tpu.pipeline_mode<synchronous>, transform_indices = @transform_8, window_bounds = array<i64: 32, 48>}, {pipeline_mode = #tpu.pipeline_mode<synchronous>, transform_indices = @transform_9, window_bounds = array<i64: 16, 48>}, {pipeline_mode = #tpu.pipeline_mode<synchronous>, transform_indices = @transform_10, window_bounds = array<i64: 1, 48>}, {pipeline_mode = #tpu.pipeline_mode<synchronous>, transform_indices = @transform_11, window_bounds = array<i64: 1, 48>}, {pipeline_mode = #tpu.pipeline_mode<synchronous>, transform_indices = @transform_12, window_bounds = array<i64: 48, 6>}, {pipeline_mode = #tpu.pipeline_mode<synchronous>, transform_indices = @transform_13, window_bounds = array<i64: 1, 6>}, {transform_indices = @transform_14, window_bounds = array<i64: 4, 8, 6>}]} {
    %c0 = arith.constant 0 : index
    %c0_0 = arith.constant 0 : index
    %c0_1 = arith.constant 0 : index
    %0 = vector.load %arg1[%c0, %c0_0, %c0_1] : memref<4x8x32xbf16, #tpu.memory_space<vmem>>, vector<4x8x32xbf16>
    %c0_2 = arith.constant 0 : index
    %c0_3 = arith.constant 0 : index
    %c0_4 = arith.constant 0 : index
    %1 = vector.load %arg2[%c0_2, %c0_3, %c0_4] : memref<4x8x8xi8, #tpu.memory_space<vmem>>, vector<4x8x8xi8>
    %2 = arith.sitofp %1 : vector<4x8x8xi8> to vector<4x8x8xf32>
    %c0_5 = arith.constant 0 : index
    %c0_6 = arith.constant 0 : index
    %c0_7 = arith.constant 0 : index
    %3 = vector.load %arg3[%c0_5, %c0_6, %c0_7] : memref<4x5x8xi8, #tpu.memory_space<vmem>>, vector<4x5x8xi8>
    %4 = arith.sitofp %3 : vector<4x5x8xi8> to vector<4x5x8xf32>
    %c0_8 = arith.constant 0 : index
    %c0_9 = arith.constant 0 : index
    %5 = vector.load %arg5[%c0_8, %c0_9] : memref<32x32xbf16, #tpu.memory_space<vmem>>, vector<32x32xbf16>
    %c0_10 = arith.constant 0 : index
    %c0_11 = arith.constant 0 : index
    %6 = vector.load %arg6[%c0_10, %c0_11] : memref<1x32xf32, #tpu.memory_space<vmem>>, vector<1x32xf32>
    %c0_12 = arith.constant 0 : index
    %c0_13 = arith.constant 0 : index
    %7 = vector.load %arg7[%c0_12, %c0_13] : memref<1x32xf32, #tpu.memory_space<vmem>>, vector<1x32xf32>
    %c0_14 = arith.constant 0 : index
    %c0_15 = arith.constant 0 : index
    %8 = vector.load %arg8[%c0_14, %c0_15] : memref<1x32xf32, #tpu.memory_space<vmem>>, vector<1x32xf32>
    %9 = vector.shape_cast %0 : vector<4x8x32xbf16> to vector<32x32xbf16>
    %cst = arith.constant dense<0.000000e+00> : vector<32x32xf32>
    %10 = tpu.matmul %9, %5, %cst {dimension_numbers = #tpu.dot_dimension_numbers<[1], [0], [0], [1], [0, 0, 1, 1], [], []>} : vector<32x32xbf16>, vector<32x32xbf16>, vector<32x32xf32> -> vector<32x32xf32>
    %11 = vector.shape_cast %10 : vector<32x32xf32> to vector<4x8x32xf32>
    %12 = vector.shape_cast %6 : vector<1x32xf32> to vector<1x1x32xf32>
    %13 = vector.broadcast %12 : vector<1x1x32xf32> to vector<4x8x32xf32>
    %14 = arith.addf %11, %13 : vector<4x8x32xf32>
    %15 = vector.shape_cast %7 : vector<1x32xf32> to vector<1x1x32xf32>
    %16 = vector.broadcast %15 : vector<1x1x32xf32> to vector<4x8x32xf32>
    %17 = arith.mulf %14, %16 : vector<4x8x32xf32>
    %cst_16 = arith.constant dense<0.000000e+00> : vector<4x8xf32>
    %18 = vector.multi_reduction <add>, %17, %cst_16 [2] : vector<4x8x32xf32> to vector<4x8xf32>
    %19 = vector.shape_cast %18 : vector<4x8xf32> to vector<4x8x1xf32>
    %20 = vector.shape_cast %8 : vector<1x32xf32> to vector<1x1x32xf32>
    %21 = vector.broadcast %20 : vector<1x1x32xf32> to vector<4x8x32xf32>
    %22 = arith.mulf %14, %21 : vector<4x8x32xf32>
    %cst_17 = arith.constant dense<0.000000e+00> : vector<4x8xf32>
    %23 = vector.multi_reduction <add>, %22, %cst_17 [2] : vector<4x8x32xf32> to vector<4x8xf32>
    %24 = vector.shape_cast %23 : vector<4x8xf32> to vector<4x1x8xf32>
    %25 = vector.broadcast %19 : vector<4x8x1xf32> to vector<4x8x8xf32>
    %26 = vector.broadcast %24 : vector<4x1x8xf32> to vector<4x8x8xf32>
    %27 = arith.addf %25, %26 : vector<4x8x8xf32>
    %cst_18 = arith.constant 0.000000e+00 : f32
    %28 = vector.broadcast %cst_18 : f32 to vector<4x8x8xf32>
    %29 = arith.cmpf oge, %27, %28 : vector<4x8x8xf32>
    %cst_19 = arith.constant 2.000000e-01 : f32
    %30 = vector.broadcast %cst_19 : f32 to vector<4x8x8xf32>
    %31 = arith.mulf %30, %27 : vector<4x8x8xf32>
    %32 = arith.select %29, %27, %31 : vector<4x8x8xi1>, vector<4x8x8xf32>
    %cst_20 = arith.constant 0.000000e+00 : f32
    %33 = vector.broadcast %cst_20 : f32 to vector<4x8x8xf32>
    %34 = arith.cmpf ogt, %2, %33 : vector<4x8x8xf32>
    %cst_21 = arith.constant -1.000000e+30 : f32
    %35 = vector.broadcast %cst_21 : f32 to vector<4x8x8xf32>
    %36 = arith.select %34, %32, %35 : vector<4x8x8xi1>, vector<4x8x8xf32>
    %cst_22 = arith.constant dense<0xFF800000> : vector<4x8xf32>
    %37 = vector.multi_reduction <maximumf>, %36, %cst_22 [2] : vector<4x8x8xf32> to vector<4x8xf32>
    %38 = vector.shape_cast %37 : vector<4x8xf32> to vector<4x8x1xf32>
    %39 = vector.broadcast %38 : vector<4x8x1xf32> to vector<4x8x8xf32>
    %40 = arith.subf %36, %39 : vector<4x8x8xf32>
    %41 = math.exp %40 : vector<4x8x8xf32>
    %42 = arith.mulf %41, %2 : vector<4x8x8xf32>
    %cst_23 = arith.constant dense<0.000000e+00> : vector<4x8xf32>
    %43 = vector.multi_reduction <add>, %42, %cst_23 [2] : vector<4x8x8xf32> to vector<4x8xf32>
    %44 = vector.shape_cast %43 : vector<4x8xf32> to vector<4x8x1xf32>
    %cst_24 = arith.constant 1.000000e-30 : f32
    %45 = vector.broadcast %cst_24 : f32 to vector<4x8x1xf32>
    %46 = arith.maximumf %44, %45 : vector<4x8x1xf32>
    %47 = tpu.reciprocal %46 {approx = true} : vector<4x8x1xf32> -> vector<4x8x1xf32>
    %48 = vector.broadcast %47 : vector<4x8x1xf32> to vector<4x8x8xf32>
    %49 = arith.mulf %42, %48 : vector<4x8x8xf32>
    %cst_25 = arith.constant dense<0.000000e+00> : vector<4x8xf32>
    %50 = vector.multi_reduction <add>, %2, %cst_25 [2] : vector<4x8x8xf32> to vector<4x8xf32>
    %51 = vector.shape_cast %50 : vector<4x8xf32> to vector<4x8x1xf32>
    %cst_26 = arith.constant 0.000000e+00 : f32
    %52 = vector.broadcast %cst_26 : f32 to vector<4x8x1xf32>
    %53 = arith.cmpf ogt, %51, %52 : vector<4x8x1xf32>
    %54 = arith.extui %53 : vector<4x8x1xi1> to vector<4x8x1xi32>
    %55 = arith.sitofp %54 : vector<4x8x1xi32> to vector<4x8x1xf32>
    %56 = arith.truncf %49 : vector<4x8x8xf32> to vector<4x8x8xbf16>
    %57 = arith.truncf %14 : vector<4x8x32xf32> to vector<4x8x32xbf16>
    "tpu.trace_start"() <{level = 10 : i32, message = "bij,bje->bie"}> : () -> ()
    %cst_27 = arith.constant dense<0.000000e+00> : vector<4x8x32xf32>
    %58 = tpu.matmul %56, %57, %cst_27 {dimension_numbers = #tpu.dot_dimension_numbers<[2], [1], [1], [2], [0, 0, 0, 1, 1, 2], [0], [0]>} : vector<4x8x8xbf16>, vector<4x8x32xbf16>, vector<4x8x32xf32> -> vector<4x8x32xf32>
    "tpu.trace_stop"() : () -> ()
    %59 = arith.extf %0 : vector<4x8x32xbf16> to vector<4x8x32xf32>
    %60 = vector.broadcast %55 : vector<4x8x1xf32> to vector<4x8x32xf32>
    %61 = arith.mulf %60, %58 : vector<4x8x32xf32>
    %62 = arith.addf %59, %61 : vector<4x8x32xf32>
    %c0_28 = arith.constant 0 : index
    %c0_29 = arith.constant 0 : index
    %63 = vector.load %arg9[%c0_28, %c0_29] : memref<32x48xbf16, #tpu.memory_space<vmem>>, vector<32x48xbf16>
    %c0_30 = arith.constant 0 : index
    %c0_31 = arith.constant 0 : index
    %64 = vector.load %arg10[%c0_30, %c0_31] : memref<16x48xbf16, #tpu.memory_space<vmem>>, vector<16x48xbf16>
    %c0_32 = arith.constant 0 : index
    %c0_33 = arith.constant 0 : index
    %65 = vector.load %arg11[%c0_32, %c0_33] : memref<1x48xf32, #tpu.memory_space<vmem>>, vector<1x48xf32>
    %c0_34 = arith.constant 0 : index
    %c0_35 = arith.constant 0 : index
    %66 = vector.load %arg12[%c0_34, %c0_35] : memref<1x48xf32, #tpu.memory_space<vmem>>, vector<1x48xf32>
    "tpu.trace_start"() <{level = 10 : i32, message = "bcs,bse->bce"}> : () -> ()
    %cst_36 = arith.constant dense<0.000000e+00> : vector<4x5x32xf32>
    %67 = tpu.matmul %4, %62, %cst_36 {dimension_numbers = #tpu.dot_dimension_numbers<[2], [1], [1], [2], [0, 0, 0, 1, 1, 2], [0], [0]>} : vector<4x5x8xf32>, vector<4x8x32xf32>, vector<4x5x32xf32> -> vector<4x5x32xf32>
    "tpu.trace_stop"() : () -> ()
    %cst_37 = arith.constant dense<0.000000e+00> : vector<4x5xf32>
    %68 = vector.multi_reduction <add>, %4, %cst_37 [2] : vector<4x5x8xf32> to vector<4x5xf32>
    %69 = arith.truncf %67 : vector<4x5x32xf32> to vector<4x5x32xbf16>
    "tpu.trace_start"() <{level = 10 : i32, message = "bce,ek->bck"}> : () -> ()
    %cst_38 = arith.constant dense<0.000000e+00> : vector<4x5x48xf32>
    %70 = tpu.matmul %69, %63, %cst_38 {dimension_numbers = #tpu.dot_dimension_numbers<[2], [0], [0, 1], [1], [0, 0, 0, 1, 1, 1], [], []>} : vector<4x5x32xbf16>, vector<32x48xbf16>, vector<4x5x48xf32> -> vector<4x5x48xf32>
    "tpu.trace_stop"() : () -> ()
    %71 = vector.shape_cast %65 : vector<1x48xf32> to vector<1x1x48xf32>
    %72 = vector.broadcast %71 : vector<1x1x48xf32> to vector<4x5x48xf32>
    %73 = arith.addf %70, %72 : vector<4x5x48xf32>
    %74 = vector.shape_cast %66 : vector<1x48xf32> to vector<1x48xf32>
    %75 = vector.broadcast %74 : vector<1x48xf32> to vector<4x48xf32>
    %c0_39 = arith.constant 0 : index
    %c0_40 = arith.constant 0 : index
    %76 = vector.load %arg4[%c0_39, %c0_40] : memref<1x16xf32, #tpu.memory_space<vmem>>, vector<1x16xf32>
    %77 = vector.shape_cast %76 : vector<1x16xf32> to vector<1x16xf32>
    %78 = vector.broadcast %77 : vector<1x16xf32> to vector<4x16xf32>
    %79 = vector.extract_strided_slice %73 {offsets = [0, 0, 0], sizes = [4, 1, 48], strides = [1, 1, 1]} : vector<4x5x48xf32> to vector<4x1x48xf32>
    %80 = vector.shape_cast %79 : vector<4x1x48xf32> to vector<4x48xf32>
    %81 = arith.truncf %78 : vector<4x16xf32> to vector<4x16xbf16>
    %cst_41 = arith.constant dense<0.000000e+00> : vector<4x48xf32>
    %82 = tpu.matmul %81, %64, %cst_41 {dimension_numbers = #tpu.dot_dimension_numbers<[1], [0], [0], [1], [0, 0, 1, 1], [], []>} : vector<4x16xbf16>, vector<16x48xbf16>, vector<4x48xf32> -> vector<4x48xf32>
    %83 = arith.addf %82, %75 : vector<4x48xf32>
    %84 = vector.extract_strided_slice %80 {offsets = [0, 0], sizes = [4, 16], strides = [1, 1]} : vector<4x48xf32> to vector<4x16xf32>
    %85 = vector.extract_strided_slice %83 {offsets = [0, 0], sizes = [4, 16], strides = [1, 1]} : vector<4x48xf32> to vector<4x16xf32>
    %86 = arith.addf %84, %85 : vector<4x16xf32>
    %87 = arith.negf %86 : vector<4x16xf32>
    %88 = math.exp %87 : vector<4x16xf32>
    %cst_42 = arith.constant 1.000000e+00 : f32
    %89 = vector.broadcast %cst_42 : f32 to vector<4x16xf32>
    %90 = arith.addf %89, %88 : vector<4x16xf32>
    %91 = arith.divf %89, %90 : vector<4x16xf32>
    %92 = vector.extract_strided_slice %80 {offsets = [0, 16], sizes = [4, 16], strides = [1, 1]} : vector<4x48xf32> to vector<4x16xf32>
    %93 = vector.extract_strided_slice %83 {offsets = [0, 16], sizes = [4, 16], strides = [1, 1]} : vector<4x48xf32> to vector<4x16xf32>
    %94 = arith.addf %92, %93 : vector<4x16xf32>
    %95 = arith.negf %94 : vector<4x16xf32>
    %96 = math.exp %95 : vector<4x16xf32>
    %cst_43 = arith.constant 1.000000e+00 : f32
    %97 = vector.broadcast %cst_43 : f32 to vector<4x16xf32>
    %98 = arith.addf %97, %96 : vector<4x16xf32>
    %99 = arith.divf %97, %98 : vector<4x16xf32>
    %100 = vector.extract_strided_slice %80 {offsets = [0, 32], sizes = [4, 16], strides = [1, 1]} : vector<4x48xf32> to vector<4x16xf32>
    %101 = vector.extract_strided_slice %83 {offsets = [0, 32], sizes = [4, 16], strides = [1, 1]} : vector<4x48xf32> to vector<4x16xf32>
    %102 = arith.mulf %91, %101 : vector<4x16xf32>
    %103 = arith.addf %100, %102 : vector<4x16xf32>
    %104 = math.tanh %103 : vector<4x16xf32>
    %cst_44 = arith.constant 1.000000e+00 : f32
    %105 = vector.broadcast %cst_44 : f32 to vector<4x16xf32>
    %106 = arith.subf %105, %99 : vector<4x16xf32>
    %107 = arith.mulf %106, %104 : vector<4x16xf32>
    %108 = arith.mulf %99, %78 : vector<4x16xf32>
    %109 = arith.addf %107, %108 : vector<4x16xf32>
    %110 = vector.extract_strided_slice %68 {offsets = [0, 0], sizes = [4, 1], strides = [1, 1]} : vector<4x5xf32> to vector<4x1xf32>
    %cst_45 = arith.constant 0.000000e+00 : f32
    %111 = vector.broadcast %cst_45 : f32 to vector<4x1xf32>
    %112 = arith.cmpf ogt, %110, %111 : vector<4x1xf32>
    %113 = vector.shape_cast %112 : vector<4x1xi1> to vector<4x1xi1>
    %114 = vector.broadcast %113 : vector<4x1xi1> to vector<4x16xi1>
    %115 = arith.select %114, %109, %78 : vector<4x16xi1>, vector<4x16xf32>
    %116 = vector.extract_strided_slice %73 {offsets = [0, 1, 0], sizes = [4, 1, 48], strides = [1, 1, 1]} : vector<4x5x48xf32> to vector<4x1x48xf32>
    %117 = vector.shape_cast %116 : vector<4x1x48xf32> to vector<4x48xf32>
    %118 = arith.truncf %115 : vector<4x16xf32> to vector<4x16xbf16>
    %cst_46 = arith.constant dense<0.000000e+00> : vector<4x48xf32>
    %119 = tpu.matmul %118, %64, %cst_46 {dimension_numbers = #tpu.dot_dimension_numbers<[1], [0], [0], [1], [0, 0, 1, 1], [], []>} : vector<4x16xbf16>, vector<16x48xbf16>, vector<4x48xf32> -> vector<4x48xf32>
    %120 = arith.addf %119, %75 : vector<4x48xf32>
    %121 = vector.extract_strided_slice %117 {offsets = [0, 0], sizes = [4, 16], strides = [1, 1]} : vector<4x48xf32> to vector<4x16xf32>
    %122 = vector.extract_strided_slice %120 {offsets = [0, 0], sizes = [4, 16], strides = [1, 1]} : vector<4x48xf32> to vector<4x16xf32>
    %123 = arith.addf %121, %122 : vector<4x16xf32>
    %124 = arith.negf %123 : vector<4x16xf32>
    %125 = math.exp %124 : vector<4x16xf32>
    %cst_47 = arith.constant 1.000000e+00 : f32
    %126 = vector.broadcast %cst_47 : f32 to vector<4x16xf32>
    %127 = arith.addf %126, %125 : vector<4x16xf32>
    %128 = arith.divf %126, %127 : vector<4x16xf32>
    %129 = vector.extract_strided_slice %117 {offsets = [0, 16], sizes = [4, 16], strides = [1, 1]} : vector<4x48xf32> to vector<4x16xf32>
    %130 = vector.extract_strided_slice %120 {offsets = [0, 16], sizes = [4, 16], strides = [1, 1]} : vector<4x48xf32> to vector<4x16xf32>
    %131 = arith.addf %129, %130 : vector<4x16xf32>
    %132 = arith.negf %131 : vector<4x16xf32>
    %133 = math.exp %132 : vector<4x16xf32>
    %cst_48 = arith.constant 1.000000e+00 : f32
    %134 = vector.broadcast %cst_48 : f32 to vector<4x16xf32>
    %135 = arith.addf %134, %133 : vector<4x16xf32>
    %136 = arith.divf %134, %135 : vector<4x16xf32>
    %137 = vector.extract_strided_slice %117 {offsets = [0, 32], sizes = [4, 16], strides = [1, 1]} : vector<4x48xf32> to vector<4x16xf32>
    %138 = vector.extract_strided_slice %120 {offsets = [0, 32], sizes = [4, 16], strides = [1, 1]} : vector<4x48xf32> to vector<4x16xf32>
    %139 = arith.mulf %128, %138 : vector<4x16xf32>
    %140 = arith.addf %137, %139 : vector<4x16xf32>
    %141 = math.tanh %140 : vector<4x16xf32>
    %cst_49 = arith.constant 1.000000e+00 : f32
    %142 = vector.broadcast %cst_49 : f32 to vector<4x16xf32>
    %143 = arith.subf %142, %136 : vector<4x16xf32>
    %144 = arith.mulf %143, %141 : vector<4x16xf32>
    %145 = arith.mulf %136, %115 : vector<4x16xf32>
    %146 = arith.addf %144, %145 : vector<4x16xf32>
    %147 = vector.extract_strided_slice %68 {offsets = [0, 1], sizes = [4, 1], strides = [1, 1]} : vector<4x5xf32> to vector<4x1xf32>
    %cst_50 = arith.constant 0.000000e+00 : f32
    %148 = vector.broadcast %cst_50 : f32 to vector<4x1xf32>
    %149 = arith.cmpf ogt, %147, %148 : vector<4x1xf32>
    %150 = vector.shape_cast %149 : vector<4x1xi1> to vector<4x1xi1>
    %151 = vector.broadcast %150 : vector<4x1xi1> to vector<4x16xi1>
    %152 = arith.select %151, %146, %115 : vector<4x16xi1>, vector<4x16xf32>
    %153 = vector.extract_strided_slice %73 {offsets = [0, 2, 0], sizes = [4, 1, 48], strides = [1, 1, 1]} : vector<4x5x48xf32> to vector<4x1x48xf32>
    %154 = vector.shape_cast %153 : vector<4x1x48xf32> to vector<4x48xf32>
    %155 = arith.truncf %152 : vector<4x16xf32> to vector<4x16xbf16>
    %cst_51 = arith.constant dense<0.000000e+00> : vector<4x48xf32>
    %156 = tpu.matmul %155, %64, %cst_51 {dimension_numbers = #tpu.dot_dimension_numbers<[1], [0], [0], [1], [0, 0, 1, 1], [], []>} : vector<4x16xbf16>, vector<16x48xbf16>, vector<4x48xf32> -> vector<4x48xf32>
    %157 = arith.addf %156, %75 : vector<4x48xf32>
    %158 = vector.extract_strided_slice %154 {offsets = [0, 0], sizes = [4, 16], strides = [1, 1]} : vector<4x48xf32> to vector<4x16xf32>
    %159 = vector.extract_strided_slice %157 {offsets = [0, 0], sizes = [4, 16], strides = [1, 1]} : vector<4x48xf32> to vector<4x16xf32>
    %160 = arith.addf %158, %159 : vector<4x16xf32>
    %161 = arith.negf %160 : vector<4x16xf32>
    %162 = math.exp %161 : vector<4x16xf32>
    %cst_52 = arith.constant 1.000000e+00 : f32
    %163 = vector.broadcast %cst_52 : f32 to vector<4x16xf32>
    %164 = arith.addf %163, %162 : vector<4x16xf32>
    %165 = arith.divf %163, %164 : vector<4x16xf32>
    %166 = vector.extract_strided_slice %154 {offsets = [0, 16], sizes = [4, 16], strides = [1, 1]} : vector<4x48xf32> to vector<4x16xf32>
    %167 = vector.extract_strided_slice %157 {offsets = [0, 16], sizes = [4, 16], strides = [1, 1]} : vector<4x48xf32> to vector<4x16xf32>
    %168 = arith.addf %166, %167 : vector<4x16xf32>
    %169 = arith.negf %168 : vector<4x16xf32>
    %170 = math.exp %169 : vector<4x16xf32>
    %cst_53 = arith.constant 1.000000e+00 : f32
    %171 = vector.broadcast %cst_53 : f32 to vector<4x16xf32>
    %172 = arith.addf %171, %170 : vector<4x16xf32>
    %173 = arith.divf %171, %172 : vector<4x16xf32>
    %174 = vector.extract_strided_slice %154 {offsets = [0, 32], sizes = [4, 16], strides = [1, 1]} : vector<4x48xf32> to vector<4x16xf32>
    %175 = vector.extract_strided_slice %157 {offsets = [0, 32], sizes = [4, 16], strides = [1, 1]} : vector<4x48xf32> to vector<4x16xf32>
    %176 = arith.mulf %165, %175 : vector<4x16xf32>
    %177 = arith.addf %174, %176 : vector<4x16xf32>
    %178 = math.tanh %177 : vector<4x16xf32>
    %cst_54 = arith.constant 1.000000e+00 : f32
    %179 = vector.broadcast %cst_54 : f32 to vector<4x16xf32>
    %180 = arith.subf %179, %173 : vector<4x16xf32>
    %181 = arith.mulf %180, %178 : vector<4x16xf32>
    %182 = arith.mulf %173, %152 : vector<4x16xf32>
    %183 = arith.addf %181, %182 : vector<4x16xf32>
    %184 = vector.extract_strided_slice %68 {offsets = [0, 2], sizes = [4, 1], strides = [1, 1]} : vector<4x5xf32> to vector<4x1xf32>
    %cst_55 = arith.constant 0.000000e+00 : f32
    %185 = vector.broadcast %cst_55 : f32 to vector<4x1xf32>
    %186 = arith.cmpf ogt, %184, %185 : vector<4x1xf32>
    %187 = vector.shape_cast %186 : vector<4x1xi1> to vector<4x1xi1>
    %188 = vector.broadcast %187 : vector<4x1xi1> to vector<4x16xi1>
    %189 = arith.select %188, %183, %152 : vector<4x16xi1>, vector<4x16xf32>
    %190 = vector.extract_strided_slice %73 {offsets = [0, 3, 0], sizes = [4, 1, 48], strides = [1, 1, 1]} : vector<4x5x48xf32> to vector<4x1x48xf32>
    %191 = vector.shape_cast %190 : vector<4x1x48xf32> to vector<4x48xf32>
    %192 = arith.truncf %189 : vector<4x16xf32> to vector<4x16xbf16>
    %cst_56 = arith.constant dense<0.000000e+00> : vector<4x48xf32>
    %193 = tpu.matmul %192, %64, %cst_56 {dimension_numbers = #tpu.dot_dimension_numbers<[1], [0], [0], [1], [0, 0, 1, 1], [], []>} : vector<4x16xbf16>, vector<16x48xbf16>, vector<4x48xf32> -> vector<4x48xf32>
    %194 = arith.addf %193, %75 : vector<4x48xf32>
    %195 = vector.extract_strided_slice %191 {offsets = [0, 0], sizes = [4, 16], strides = [1, 1]} : vector<4x48xf32> to vector<4x16xf32>
    %196 = vector.extract_strided_slice %194 {offsets = [0, 0], sizes = [4, 16], strides = [1, 1]} : vector<4x48xf32> to vector<4x16xf32>
    %197 = arith.addf %195, %196 : vector<4x16xf32>
    %198 = arith.negf %197 : vector<4x16xf32>
    %199 = math.exp %198 : vector<4x16xf32>
    %cst_57 = arith.constant 1.000000e+00 : f32
    %200 = vector.broadcast %cst_57 : f32 to vector<4x16xf32>
    %201 = arith.addf %200, %199 : vector<4x16xf32>
    %202 = arith.divf %200, %201 : vector<4x16xf32>
    %203 = vector.extract_strided_slice %191 {offsets = [0, 16], sizes = [4, 16], strides = [1, 1]} : vector<4x48xf32> to vector<4x16xf32>
    %204 = vector.extract_strided_slice %194 {offsets = [0, 16], sizes = [4, 16], strides = [1, 1]} : vector<4x48xf32> to vector<4x16xf32>
    %205 = arith.addf %203, %204 : vector<4x16xf32>
    %206 = arith.negf %205 : vector<4x16xf32>
    %207 = math.exp %206 : vector<4x16xf32>
    %cst_58 = arith.constant 1.000000e+00 : f32
    %208 = vector.broadcast %cst_58 : f32 to vector<4x16xf32>
    %209 = arith.addf %208, %207 : vector<4x16xf32>
    %210 = arith.divf %208, %209 : vector<4x16xf32>
    %211 = vector.extract_strided_slice %191 {offsets = [0, 32], sizes = [4, 16], strides = [1, 1]} : vector<4x48xf32> to vector<4x16xf32>
    %212 = vector.extract_strided_slice %194 {offsets = [0, 32], sizes = [4, 16], strides = [1, 1]} : vector<4x48xf32> to vector<4x16xf32>
    %213 = arith.mulf %202, %212 : vector<4x16xf32>
    %214 = arith.addf %211, %213 : vector<4x16xf32>
    %215 = math.tanh %214 : vector<4x16xf32>
    %cst_59 = arith.constant 1.000000e+00 : f32
    %216 = vector.broadcast %cst_59 : f32 to vector<4x16xf32>
    %217 = arith.subf %216, %210 : vector<4x16xf32>
    %218 = arith.mulf %217, %215 : vector<4x16xf32>
    %219 = arith.mulf %210, %189 : vector<4x16xf32>
    %220 = arith.addf %218, %219 : vector<4x16xf32>
    %221 = vector.extract_strided_slice %68 {offsets = [0, 3], sizes = [4, 1], strides = [1, 1]} : vector<4x5xf32> to vector<4x1xf32>
    %cst_60 = arith.constant 0.000000e+00 : f32
    %222 = vector.broadcast %cst_60 : f32 to vector<4x1xf32>
    %223 = arith.cmpf ogt, %221, %222 : vector<4x1xf32>
    %224 = vector.shape_cast %223 : vector<4x1xi1> to vector<4x1xi1>
    %225 = vector.broadcast %224 : vector<4x1xi1> to vector<4x16xi1>
    %226 = arith.select %225, %220, %189 : vector<4x16xi1>, vector<4x16xf32>
    %227 = vector.extract_strided_slice %73 {offsets = [0, 4, 0], sizes = [4, 1, 48], strides = [1, 1, 1]} : vector<4x5x48xf32> to vector<4x1x48xf32>
    %228 = vector.shape_cast %227 : vector<4x1x48xf32> to vector<4x48xf32>
    %229 = arith.truncf %226 : vector<4x16xf32> to vector<4x16xbf16>
    %cst_61 = arith.constant dense<0.000000e+00> : vector<4x48xf32>
    %230 = tpu.matmul %229, %64, %cst_61 {dimension_numbers = #tpu.dot_dimension_numbers<[1], [0], [0], [1], [0, 0, 1, 1], [], []>} : vector<4x16xbf16>, vector<16x48xbf16>, vector<4x48xf32> -> vector<4x48xf32>
    %231 = arith.addf %230, %75 : vector<4x48xf32>
    %232 = vector.extract_strided_slice %228 {offsets = [0, 0], sizes = [4, 16], strides = [1, 1]} : vector<4x48xf32> to vector<4x16xf32>
    %233 = vector.extract_strided_slice %231 {offsets = [0, 0], sizes = [4, 16], strides = [1, 1]} : vector<4x48xf32> to vector<4x16xf32>
    %234 = arith.addf %232, %233 : vector<4x16xf32>
    %235 = arith.negf %234 : vector<4x16xf32>
    %236 = math.exp %235 : vector<4x16xf32>
    %cst_62 = arith.constant 1.000000e+00 : f32
    %237 = vector.broadcast %cst_62 : f32 to vector<4x16xf32>
    %238 = arith.addf %237, %236 : vector<4x16xf32>
    %239 = arith.divf %237, %238 : vector<4x16xf32>
    %240 = vector.extract_strided_slice %228 {offsets = [0, 16], sizes = [4, 16], strides = [1, 1]} : vector<4x48xf32> to vector<4x16xf32>
    %241 = vector.extract_strided_slice %231 {offsets = [0, 16], sizes = [4, 16], strides = [1, 1]} : vector<4x48xf32> to vector<4x16xf32>
    %242 = arith.addf %240, %241 : vector<4x16xf32>
    %243 = arith.negf %242 : vector<4x16xf32>
    %244 = math.exp %243 : vector<4x16xf32>
    %cst_63 = arith.constant 1.000000e+00 : f32
    %245 = vector.broadcast %cst_63 : f32 to vector<4x16xf32>
    %246 = arith.addf %245, %244 : vector<4x16xf32>
    %247 = arith.divf %245, %246 : vector<4x16xf32>
    %248 = vector.extract_strided_slice %228 {offsets = [0, 32], sizes = [4, 16], strides = [1, 1]} : vector<4x48xf32> to vector<4x16xf32>
    %249 = vector.extract_strided_slice %231 {offsets = [0, 32], sizes = [4, 16], strides = [1, 1]} : vector<4x48xf32> to vector<4x16xf32>
    %250 = arith.mulf %239, %249 : vector<4x16xf32>
    %251 = arith.addf %248, %250 : vector<4x16xf32>
    %252 = math.tanh %251 : vector<4x16xf32>
    %cst_64 = arith.constant 1.000000e+00 : f32
    %253 = vector.broadcast %cst_64 : f32 to vector<4x16xf32>
    %254 = arith.subf %253, %247 : vector<4x16xf32>
    %255 = arith.mulf %254, %252 : vector<4x16xf32>
    %256 = arith.mulf %247, %226 : vector<4x16xf32>
    %257 = arith.addf %255, %256 : vector<4x16xf32>
    %258 = vector.extract_strided_slice %68 {offsets = [0, 4], sizes = [4, 1], strides = [1, 1]} : vector<4x5xf32> to vector<4x1xf32>
    %cst_65 = arith.constant 0.000000e+00 : f32
    %259 = vector.broadcast %cst_65 : f32 to vector<4x1xf32>
    %260 = arith.cmpf ogt, %258, %259 : vector<4x1xf32>
    %261 = vector.shape_cast %260 : vector<4x1xi1> to vector<4x1xi1>
    %262 = vector.broadcast %261 : vector<4x1xi1> to vector<4x16xi1>
    %263 = arith.select %262, %257, %226 : vector<4x16xi1>, vector<4x16xf32>
    %c0_66 = arith.constant 0 : index
    %c0_67 = arith.constant 0 : index
    %264 = vector.load %arg13[%c0_66, %c0_67] : memref<48x6xbf16, #tpu.memory_space<vmem>>, vector<48x6xbf16>
    %c0_68 = arith.constant 0 : index
    %c0_69 = arith.constant 0 : index
    %265 = vector.load %arg14[%c0_68, %c0_69] : memref<1x6xf32, #tpu.memory_space<vmem>>, vector<1x6xf32>
    %266 = vector.shape_cast %62 : vector<4x8x32xf32> to vector<32x32xf32>
    %267 = arith.truncf %266 : vector<32x32xf32> to vector<32x32xbf16>
    %268 = vector.extract_strided_slice %264 {offsets = [0, 0], sizes = [32, 6], strides = [1, 1]} : vector<48x6xbf16> to vector<32x6xbf16>
    %cst_70 = arith.constant dense<0.000000e+00> : vector<32x6xf32>
    %269 = tpu.matmul %267, %268, %cst_70 {dimension_numbers = #tpu.dot_dimension_numbers<[1], [0], [0], [1], [0, 0, 1, 1], [], []>} : vector<32x32xbf16>, vector<32x6xbf16>, vector<32x6xf32> -> vector<32x6xf32>
    %270 = vector.shape_cast %269 : vector<32x6xf32> to vector<4x8x6xf32>
    %271 = arith.truncf %263 : vector<4x16xf32> to vector<4x16xbf16>
    %272 = vector.extract_strided_slice %264 {offsets = [32, 0], sizes = [16, 6], strides = [1, 1]} : vector<48x6xbf16> to vector<16x6xbf16>
    %cst_71 = arith.constant dense<0.000000e+00> : vector<4x6xf32>
    %273 = tpu.matmul %271, %272, %cst_71 {dimension_numbers = #tpu.dot_dimension_numbers<[1], [0], [0], [1], [0, 0, 1, 1], [], []>} : vector<4x16xbf16>, vector<16x6xbf16>, vector<4x6xf32> -> vector<4x6xf32>
    %274 = vector.broadcast %265 : vector<1x6xf32> to vector<4x6xf32>
    %275 = arith.addf %273, %274 : vector<4x6xf32>
    %276 = vector.shape_cast %275 : vector<4x6xf32> to vector<4x1x6xf32>
    %277 = vector.broadcast %276 : vector<4x1x6xf32> to vector<4x8x6xf32>
    %278 = arith.addf %270, %277 : vector<4x8x6xf32>
    %c0_72 = arith.constant 0 : index
    %c0_73 = arith.constant 0 : index
    %c0_74 = arith.constant 0 : index
    %279 = vector.load %arg15[%c0_72, %c0_73, %c0_74] : memref<4x8x6xf32, #tpu.memory_space<vmem>>, vector<4x8x6xf32>
    tpu.vector_store %arg15[%c0_72, %c0_73, %c0_74], %278 {strides = array<i32>} : memref<4x8x6xf32, #tpu.memory_space<vmem>>, vector<4x8x6xf32>,
    return
  }
  func.func @transform_0(%arg0: i32) -> (i32, i32, i32) {
    %c0_i32 = arith.constant 0 : i32
    %c0_i32_0 = arith.constant 0 : i32
    %c0_i32_1 = arith.constant 0 : i32
    return %arg0, %c0_i32, %c0_i32_0 : i32, i32, i32
  }
  func.func @transform_1(%arg0: i32) -> (i32, i32, i32) {
    %c0_i32 = arith.constant 0 : i32
    %c0_i32_0 = arith.constant 0 : i32
    %c0_i32_1 = arith.constant 0 : i32
    return %arg0, %c0_i32, %c0_i32_0 : i32, i32, i32
  }
  func.func @transform_2(%arg0: i32) -> (i32, i32, i32) {
    %c0_i32 = arith.constant 0 : i32
    %c0_i32_0 = arith.constant 0 : i32
    %c0_i32_1 = arith.constant 0 : i32
    return %arg0, %c0_i32, %c0_i32_0 : i32, i32, i32
  }
  func.func @transform_3(%arg0: i32) -> (i32, i32) {
    %c0_i32 = arith.constant 0 : i32
    %c0_i32_0 = arith.constant 0 : i32
    %c0_i32_1 = arith.constant 0 : i32
    return %c0_i32, %c0_i32_0 : i32, i32
  }
  func.func @transform_4(%arg0: i32) -> (i32, i32) {
    %c0_i32 = arith.constant 0 : i32
    %c0_i32_0 = arith.constant 0 : i32
    %c0_i32_1 = arith.constant 0 : i32
    return %c0_i32, %c0_i32_0 : i32, i32
  }
  func.func @transform_5(%arg0: i32) -> (i32, i32) {
    %c0_i32 = arith.constant 0 : i32
    %c0_i32_0 = arith.constant 0 : i32
    %c0_i32_1 = arith.constant 0 : i32
    return %c0_i32, %c0_i32_0 : i32, i32
  }
  func.func @transform_6(%arg0: i32) -> (i32, i32) {
    %c0_i32 = arith.constant 0 : i32
    %c0_i32_0 = arith.constant 0 : i32
    %c0_i32_1 = arith.constant 0 : i32
    return %c0_i32, %c0_i32_0 : i32, i32
  }
  func.func @transform_7(%arg0: i32) -> (i32, i32) {
    %c0_i32 = arith.constant 0 : i32
    %c0_i32_0 = arith.constant 0 : i32
    %c0_i32_1 = arith.constant 0 : i32
    return %c0_i32, %c0_i32_0 : i32, i32
  }
  func.func @transform_8(%arg0: i32) -> (i32, i32) {
    %c0_i32 = arith.constant 0 : i32
    %c0_i32_0 = arith.constant 0 : i32
    %c0_i32_1 = arith.constant 0 : i32
    return %c0_i32, %c0_i32_0 : i32, i32
  }
  func.func @transform_9(%arg0: i32) -> (i32, i32) {
    %c0_i32 = arith.constant 0 : i32
    %c0_i32_0 = arith.constant 0 : i32
    %c0_i32_1 = arith.constant 0 : i32
    return %c0_i32, %c0_i32_0 : i32, i32
  }
  func.func @transform_10(%arg0: i32) -> (i32, i32) {
    %c0_i32 = arith.constant 0 : i32
    %c0_i32_0 = arith.constant 0 : i32
    %c0_i32_1 = arith.constant 0 : i32
    return %c0_i32, %c0_i32_0 : i32, i32
  }
  func.func @transform_11(%arg0: i32) -> (i32, i32) {
    %c0_i32 = arith.constant 0 : i32
    %c0_i32_0 = arith.constant 0 : i32
    %c0_i32_1 = arith.constant 0 : i32
    return %c0_i32, %c0_i32_0 : i32, i32
  }
  func.func @transform_12(%arg0: i32) -> (i32, i32) {
    %c0_i32 = arith.constant 0 : i32
    %c0_i32_0 = arith.constant 0 : i32
    %c0_i32_1 = arith.constant 0 : i32
    return %c0_i32, %c0_i32_0 : i32, i32
  }
  func.func @transform_13(%arg0: i32) -> (i32, i32) {
    %c0_i32 = arith.constant 0 : i32
    %c0_i32_0 = arith.constant 0 : i32
    %c0_i32_1 = arith.constant 0 : i32
    return %c0_i32, %c0_i32_0 : i32, i32
  }
  func.func @transform_14(%arg0: i32) -> (i32, i32, i32) {
    %c0_i32 = arith.constant 0 : i32
    %c0_i32_0 = arith.constant 0 : i32
    %c0_i32_1 = arith.constant 0 : i32
    return %arg0, %c0_i32, %c0_i32_0 : i32, i32, i32
  }
}

</mosaic_0001>

<llo_original>
// kernel: tpu_custom_call.1
$region0: #{tpu_custom_call.1}
  #allocation0 [shape = 'u32[]', space=smem, size = 0x4, offset = 0x4, fixed_abs, tag = 'smem constant byte address 0x4 - core index']
  #allocation1 [shape = 'u32[72,128]{1,0:T(1,128)}', space=vmem, size = 0x9000, scoped, tag = 'internal scratch']
  %s0 = inlined_call_operand.vmem [shape: bf16[8,8,32], index: 0, kind: input, shape index: {}]
  %s1 = inlined_call_operand.vmem [shape: s8[8,8,8], index: 1, kind: input, shape index: {}]
  %s2 = inlined_call_operand.vmem [shape: s8[8,5,8], index: 2, kind: input, shape index: {}]
  %s3 = inlined_call_operand.hbm [shape: f32[1,16], index: 3, kind: input, shape index: {}]
  %s4 = inlined_call_operand.hbm [shape: bf16[32,32], index: 4, kind: input, shape index: {}]
  %s5 = inlined_call_operand.hbm [shape: f32[1,32], index: 5, kind: input, shape index: {}]
  %s6 = inlined_call_operand.hbm [shape: f32[1,32], index: 6, kind: input, shape index: {}]
  %s7 = inlined_call_operand.hbm [shape: f32[1,32], index: 7, kind: input, shape index: {}]
  %s8 = inlined_call_operand.hbm [shape: bf16[32,48], index: 8, kind: input, shape index: {}]
  %s9 = inlined_call_operand.vmem [shape: bf16[16,48], index: 9, kind: input, shape index: {}]
  %s10 = inlined_call_operand.vmem [shape: f32[1,48], index: 10, kind: input, shape index: {}]
  %s11 = inlined_call_operand.vmem [shape: f32[1,48], index: 11, kind: input, shape index: {}]
  %s12 = inlined_call_operand.vmem [shape: bf16[48,6], index: 12, kind: input, shape index: {}]
  %s13 = inlined_call_operand.vmem [shape: f32[1,6], index: 13, kind: input, shape index: {}]
  %s14 = inlined_call_operand.vmem [shape: f32[8,8,6], index: 14, kind: output, shape index: {}]
  %s15 = sld [smem:[#allocation0]]
  $region113: #{tpu_custom_call.1} parent=0
    _
  %s17 = ssub.s32 1, %s15
  %s18 = scalar_select 0, %s17, %s15
  $region1: #{tpu_custom_call.1} parent=0
    #allocation2 [shape = 'u8[512]{0}', space=vmem, size = 0x400, scoped, tag = 'input window, operand 3, single buffered']
    #allocation3 [shape = 's32[2]{0}', space=sflag, size = 0x8, scoped, tag = 'scoped memory for tpu_custom_call.1']
    #allocation4 [shape = 'u8[8192]{0}', space=vmem, size = 0x2000, scoped, tag = 'input window, operand 4, single buffered']
    #allocation5 [shape = 's32[1]{0}', space=sflag, size = 0x4, scoped, tag = 'scoped memory for tpu_custom_call.1']
    #allocation6 [shape = 'u8[512]{0}', space=vmem, size = 0x400, scoped, tag = 'input window, operand 5, single buffered']
    #allocation7 [shape = 'u8[512]{0}', space=vmem, size = 0x400, scoped, tag = 'input window, operand 6, single buffered']
    #allocation8 [shape = 's32[1]{0}', space=sflag, size = 0x4, scoped, tag = 'scoped memory for tpu_custom_call.1']
    #allocation9 [shape = 'u8[512]{0}', space=vmem, size = 0x400, scoped, tag = 'input window, operand 7, single buffered']
    #allocation10 [shape = 'u8[8192]{0}', space=vmem, size = 0x2000, scoped, tag = 'input window, operand 8, single buffered']
    #allocation11 [shape = 's32[1]{0}', space=sflag, size = 0x4, scoped, tag = 'scoped memory for tpu_custom_call.1']
    %19 = vsyncpa [#allocation3], 0
    %20 = vsyncpa [#allocation5], 0
    %21 = vsyncpa [#allocation8], 0
    %22 = vsyncpa [#allocation11], 0
    loop: start=0, step=1, limit=4
    $region2: #{tpu_custom_call.1} parent=1 // loop_pre_header
      _
    $region3: #{tpu_custom_call.1} parent=1 // loop_header
      %s24 = sphi 0, %s28
      %p25 = scmp.ge.s32.totalorder %s24, 4
      %s34 = sphi 0, %s36
      %s37 = sphi 0, %s34
      %s38 = sphi 0, %s37
      %s54 = sphi 0, %s38
      %s60 = sphi 0, %s62
      %s63 = sphi 0, %s60
      %s64 = sphi 0, %s63
      %s80 = sphi 0, %s64
      %s86 = sphi 0, %s88
      %s89 = sphi 0, %s86
      %s90 = sphi 0, %s89
      %s106 = sphi 0, %s90
      %s110 = sphi 0, %s110
      %s112 = sphi 0, %s110
      %s113 = sphi 0, %s112
      %s127 = sphi 0, %s113
      %s131 = sphi 0, %s131
      %s133 = sphi 0, %s131
      %s134 = sphi 0, %s133
      %s148 = sphi 0, %s134
      %s152 = sphi 0, %s152
      %s154 = sphi 0, %s152
      %s155 = sphi 0, %s154
      %s169 = sphi 0, %s155
      %s173 = sphi 0, %s173
      %s175 = sphi 0, %s173
      %s176 = sphi 0, %s175
      %s190 = sphi 0, %s176
      %s194 = sphi 0, %s194
      %s196 = sphi 0, %s194
      %s197 = sphi 0, %s196
      %s211 = sphi 0, %s197
      %s215 = sphi 0, %s215
      %s217 = sphi 0, %s215
      %s218 = sphi 0, %s217
      %s232 = sphi 0, %s218
      %s236 = sphi 0, %s236
      %s238 = sphi 0, %s236
      %s239 = sphi 0, %s238
      %s253 = sphi 0, %s239
      %s257 = sphi 0, %s257
      %s259 = sphi 0, %s257
      %s260 = sphi 0, %s259
      %s274 = sphi 0, %s260
      %s278 = sphi 0, %s278
      %s280 = sphi 0, %s278
      %s281 = sphi 0, %s280
      %s295 = sphi 0, %s281
      %s299 = sphi 0, %s299
      %s301 = sphi 0, %s299
      %s302 = sphi 0, %s301
      %s316 = sphi 0, %s302
      %s320 = sphi 0, %s320
      %s322 = sphi 0, %s320
      %s323 = sphi 0, %s322
      %s337 = sphi 0, %s323
      %s343 = sphi 0, %s345
      %s346 = sphi 0, %s343
      %s347 = sphi 0, %s346
      %s363 = sphi 0, %s347
    $region4: #{tpu_custom_call.1} parent=1 // loop_header_branch
      %27 = sbr.rel (%p25) target = $region8
    $region5: #{tpu_custom_call.1} parent=1 // loop_body
      %s29 = ssub.s32 %s24, 1
      %s30 = ssub.s32 %s24, 2
      %s31 = sadd.s32 %s24, 1
      %s32 = ssub.s32 %s24, %s31
      %p33 = scmp.eq.s32.totalorder %s32, 0
      %s35 = sadd.s32 %s34, 1
      %s36 = scalar_select %p33, %s34, %s35
      %p39 = pneg %p33
      %p40 = scmp.eq.s32.totalorder %s24, 1
      %p41 = por %p39, %p40
      %p42 = scmp.ne.s32.totalorder %s34, %s37
      %p43 = scmp.eq.s32.totalorder %s24, 0
      %p44 = por %p42, %p43
      %p45 = scmp.ne.s32.totalorder %s34, %s37
      %p46 = scmp.eq.s32.totalorder %s29, 1
      %p47 = por %p45, %p46
      %p48 = scmp.ne.s32.totalorder %s37, %s38
      %p49 = scmp.eq.s32.totalorder %s29, 0
      %p50 = por %p48, %p49
      %p51 = scmp.ne.s32.totalorder %s37, %s38
      %p52 = scmp.eq.s32.totalorder %s30, 1
      %p53 = por %p51, %p52
      %p55 = scmp.ne.s32.totalorder %s38, %s54
      %p56 = scmp.eq.s32.totalorder %s30, 0
      %p57 = por %p55, %p56
      %s58 = ssub.s32 %s24, %s31
      %p59 = scmp.eq.s32.totalorder %s58, 0
      %s61 = sadd.s32 %s60, 1
      %s62 = scalar_select %p59, %s60, %s61
      %p65 = pneg %p59
      %p66 = scmp.eq.s32.totalorder %s24, 1
      %p67 = por %p65, %p66
      %p68 = scmp.ne.s32.totalorder %s60, %s63
      %p69 = scmp.eq.s32.totalorder %s24, 0
      %p70 = por %p68, %p69
      %p71 = scmp.ne.s32.totalorder %s60, %s63
      %p72 = scmp.eq.s32.totalorder %s29, 1
      %p73 = por %p71, %p72
      %p74 = scmp.ne.s32.totalorder %s63, %s64
      %p75 = scmp.eq.s32.totalorder %s29, 0
      %p76 = por %p74, %p75
      %p77 = scmp.ne.s32.totalorder %s63, %s64
      %p78 = scmp.eq.s32.totalorder %s30, 1
      %p79 = por %p77, %p78
      %p81 = scmp.ne.s32.totalorder %s64, %s80
      %p82 = scmp.eq.s32.totalorder %s30, 0
      %p83 = por %p81, %p82
      %s84 = ssub.s32 %s24, %s31
      %p85 = scmp.eq.s32.totalorder %s84, 0
      %s87 = sadd.s32 %s86, 1
      %s88 = scalar_select %p85, %s86, %s87
      %p91 = pneg %p85
      %p92 = scmp.eq.s32.totalorder %s24, 1
      %p93 = por %p91, %p92
      %p94 = scmp.ne.s32.totalorder %s86, %s89
      %p95 = scmp.eq.s32.totalorder %s24, 0
      %p96 = por %p94, %p95
      %p97 = scmp.ne.s32.totalorder %s86, %s89
      %p98 = scmp.eq.s32.totalorder %s29, 1
      %p99 = por %p97, %p98
      %p100 = scmp.ne.s32.totalorder %s89, %s90
      %p101 = scmp.eq.s32.totalorder %s29, 0
      %p102 = por %p100, %p101
      %p103 = scmp.ne.s32.totalorder %s89, %s90
      %p104 = scmp.eq.s32.totalorder %s30, 1
      %p105 = por %p103, %p104
      %p107 = scmp.ne.s32.totalorder %s90, %s106
      %p108 = scmp.eq.s32.totalorder %s30, 0
      %p109 = por %p107, %p108
      %s111 = sadd.s32 %s110, 1
      %p114 = scmp.eq.s32.totalorder %s24, 1
      %p115 = scmp.ne.s32.totalorder %s110, %s112
      %p116 = scmp.eq.s32.totalorder %s24, 0
      %p117 = por %p115, %p116
      %p118 = scmp.ne.s32.totalorder %s110, %s112
      %p119 = scmp.eq.s32.totalorder %s29, 1
      %p120 = por %p118, %p119
      %p121 = scmp.ne.s32.totalorder %s112, %s113
      %p122 = scmp.eq.s32.totalorder %s29, 0
      %p123 = por %p121, %p122
      %p124 = scmp.ne.s32.totalorder %s112, %s113
      %p125 = scmp.eq.s32.totalorder %s30, 1
      %p126 = por %p124, %p125
      %p128 = scmp.ne.s32.totalorder %s113, %s127
      %p129 = scmp.eq.s32.totalorder %s30, 0
      %p130 = por %p128, %p129
      %s132 = sadd.s32 %s131, 1
      %p135 = scmp.eq.s32.totalorder %s24, 1
      %p136 = scmp.ne.s32.totalorder %s131, %s133
      %p137 = scmp.eq.s32.totalorder %s24, 0
      %p138 = por %p136, %p137
      %p139 = scmp.ne.s32.totalorder %s131, %s133
      %p140 = scmp.eq.s32.totalorder %s29, 1
      %p141 = por %p139, %p140
      %p142 = scmp.ne.s32.totalorder %s133, %s134
      %p143 = scmp.eq.s32.totalorder %s29, 0
      %p144 = por %p142, %p143
      %p145 = scmp.ne.s32.totalorder %s133, %s134
      %p146 = scmp.eq.s32.totalorder %s30, 1
      %p147 = por %p145, %p146
      %p149 = scmp.ne.s32.totalorder %s134, %s148
      %p150 = scmp.eq.s32.totalorder %s30, 0
      %p151 = por %p149, %p150
      %s153 = sadd.s32 %s152, 1
      %p156 = scmp.eq.s32.totalorder %s24, 1
      %p157 = scmp.ne.s32.totalorder %s152, %s154
      %p158 = scmp.eq.s32.totalorder %s24, 0
      %p159 = por %p157, %p158
      %p160 = scmp.ne.s32.totalorder %s152, %s154
      %p161 = scmp.eq.s32.totalorder %s29, 1
      %p162 = por %p160, %p161
      %p163 = scmp.ne.s32.totalorder %s154, %s155
      %p164 = scmp.eq.s32.totalorder %s29, 0
      %p165 = por %p163, %p164
      %p166 = scmp.ne.s32.totalorder %s154, %s155
      %p167 = scmp.eq.s32.totalorder %s30, 1
      %p168 = por %p166, %p167
      %p170 = scmp.ne.s32.totalorder %s155, %s169
      %p171 = scmp.eq.s32.totalorder %s30, 0
      %p172 = por %p170, %p171
      %s174 = sadd.s32 %s173, 1
      %p177 = scmp.eq.s32.totalorder %s24, 1
      %p178 = scmp.ne.s32.totalorder %s173, %s175
      %p179 = scmp.eq.s32.totalorder %s24, 0
      %p180 = por %p178, %p179
      %p181 = scmp.ne.s32.totalorder %s173, %s175
      %p182 = scmp.eq.s32.totalorder %s29, 1
      %p183 = por %p181, %p182
      %p184 = scmp.ne.s32.totalorder %s175, %s176
      %p185 = scmp.eq.s32.totalorder %s29, 0
      %p186 = por %p184, %p185
      %p187 = scmp.ne.s32.totalorder %s175, %s176
      %p188 = scmp.eq.s32.totalorder %s30, 1
      %p189 = por %p187, %p188
      %p191 = scmp.ne.s32.totalorder %s176, %s190
      %p192 = scmp.eq.s32.totalorder %s30, 0
      %p193 = por %p191, %p192
      %s195 = sadd.s32 %s194, 1
      %p198 = scmp.eq.s32.totalorder %s24, 1
      %p199 = scmp.ne.s32.totalorder %s194, %s196
      %p200 = scmp.eq.s32.totalorder %s24, 0
      %p201 = por %p199, %p200
      %p202 = scmp.ne.s32.totalorder %s194, %s196
      %p203 = scmp.eq.s32.totalorder %s29, 1
      %p204 = por %p202, %p203
      %p205 = scmp.ne.s32.totalorder %s196, %s197
      %p206 = scmp.eq.s32.totalorder %s29, 0
      %p207 = por %p205, %p206
      %p208 = scmp.ne.s32.totalorder %s196, %s197
      %p209 = scmp.eq.s32.totalorder %s30, 1
      %p210 = por %p208, %p209
      %p212 = scmp.ne.s32.totalorder %s197, %s211
      %p213 = scmp.eq.s32.totalorder %s30, 0
      %p214 = por %p212, %p213
      %s216 = sadd.s32 %s215, 1
      %p219 = scmp.eq.s32.totalorder %s24, 1
      %p220 = scmp.ne.s32.totalorder %s215, %s217
      %p221 = scmp.eq.s32.totalorder %s24, 0
      %p222 = por %p220, %p221
      %p223 = scmp.ne.s32.totalorder %s215, %s217
      %p224 = scmp.eq.s32.totalorder %s29, 1
      %p225 = por %p223, %p224
      %p226 = scmp.ne.s32.totalorder %s217, %s218
      %p227 = scmp.eq.s32.totalorder %s29, 0
      %p228 = por %p226, %p227
      %p229 = scmp.ne.s32.totalorder %s217, %s218
      %p230 = scmp.eq.s32.totalorder %s30, 1
      %p231 = por %p229, %p230
      %p233 = scmp.ne.s32.totalorder %s218, %s232
      %p234 = scmp.eq.s32.totalorder %s30, 0
      %p235 = por %p233, %p234
      %s237 = sadd.s32 %s236, 1
      %p240 = scmp.eq.s32.totalorder %s24, 1
      %p241 = scmp.ne.s32.totalorder %s236, %s238
      %p242 = scmp.eq.s32.totalorder %s24, 0
      %p243 = por %p241, %p242
      %p244 = scmp.ne.s32.totalorder %s236, %s238
      %p245 = scmp.eq.s32.totalorder %s29, 1
      %p246 = por %p244, %p245
      %p247 = scmp.ne.s32.totalorder %s238, %s239
      %p248 = scmp.eq.s32.totalorder %s29, 0
      %p249 = por %p247, %p248
      %p250 = scmp.ne.s32.totalorder %s238, %s239
      %p251 = scmp.eq.s32.totalorder %s30, 1
      %p252 = por %p250, %p251
      %p254 = scmp.ne.s32.totalorder %s239, %s253
      %p255 = scmp.eq.s32.totalorder %s30, 0
      %p256 = por %p254, %p255
      %s258 = sadd.s32 %s257, 1
      %p261 = scmp.eq.s32.totalorder %s24, 1
      %p262 = scmp.ne.s32.totalorder %s257, %s259
      %p263 = scmp.eq.s32.totalorder %s24, 0
      %p264 = por %p262, %p263
      %p265 = scmp.ne.s32.totalorder %s257, %s259
      %p266 = scmp.eq.s32.totalorder %s29, 1
      %p267 = por %p265, %p266
      %p268 = scmp.ne.s32.totalorder %s259, %s260
      %p269 = scmp.eq.s32.totalorder %s29, 0
      %p270 = por %p268, %p269
      %p271 = scmp.ne.s32.totalorder %s259, %s260
      %p272 = scmp.eq.s32.totalorder %s30, 1
      %p273 = por %p271, %p272
      %p275 = scmp.ne.s32.totalorder %s260, %s274
      %p276 = scmp.eq.s32.totalorder %s30, 0
      %p277 = por %p275, %p276
      %s279 = sadd.s32 %s278, 1
      %p282 = scmp.eq.s32.totalorder %s24, 1
      %p283 = scmp.ne.s32.totalorder %s278, %s280
      %p284 = scmp.eq.s32.totalorder %s24, 0
      %p285 = por %p283, %p284
      %p286 = scmp.ne.s32.totalorder %s278, %s280
      %p287 = scmp.eq.s32.totalorder %s29, 1
      %p288 = por %p286, %p287
      %p289 = scmp.ne.s32.totalorder %s280, %s281
      %p290 = scmp.eq.s32.totalorder %s29, 0
      %p291 = por %p289, %p290
      %p292 = scmp.ne.s32.totalorder %s280, %s281
      %p293 = scmp.eq.s32.totalorder %s30, 1
      %p294 = por %p292, %p293
      %p296 = scmp.ne.s32.totalorder %s281, %s295
      %p297 = scmp.eq.s32.totalorder %s30, 0
      %p298 = por %p296, %p297
      %s300 = sadd.s32 %s299, 1
      %p303 = scmp.eq.s32.totalorder %s24, 1
      %p304 = scmp.ne.s32.totalorder %s299, %s301
      %p305 = scmp.eq.s32.totalorder %s24, 0
      %p306 = por %p304, %p305
      %p307 = scmp.ne.s32.totalorder %s299, %s301
      %p308 = scmp.eq.s32.totalorder %s29, 1
      %p309 = por %p307, %p308
      %p310 = scmp.ne.s32.totalorder %s301, %s302
      %p311 = scmp.eq.s32.totalorder %s29, 0
      %p312 = por %p310, %p311
      %p313 = scmp.ne.s32.totalorder %s301, %s302
      %p314 = scmp.eq.s32.totalorder %s30, 1
      %p315 = por %p313, %p314
      %p317 = scmp.ne.s32.totalorder %s302, %s316
      %p318 = scmp.eq.s32.totalorder %s30, 0
      %p319 = por %p317, %p318
      %s321 = sadd.s32 %s320, 1
      %p324 = scmp.eq.s32.totalorder %s24, 1
      %p325 = scmp.ne.s32.totalorder %s320, %s322
      %p326 = scmp.eq.s32.totalorder %s24, 0
      %p327 = por %p325, %p326
      %p328 = scmp.ne.s32.totalorder %s320, %s322
      %p329 = scmp.eq.s32.totalorder %s29, 1
      %p330 = por %p328, %p329
      %p331 = scmp.ne.s32.totalorder %s322, %s323
      %p332 = scmp.eq.s32.totalorder %s29, 0
      %p333 = por %p331, %p332
      %p334 = scmp.ne.s32.totalorder %s322, %s323
      %p335 = scmp.eq.s32.totalorder %s30, 1
      %p336 = por %p334, %p335
      %p338 = scmp.ne.s32.totalorder %s323, %s337
      %p339 = scmp.eq.s32.totalorder %s30, 0
      %p340 = por %p338, %p339
      %s341 = ssub.s32 %s24, %s31
      %p342 = scmp.eq.s32.totalorder %s341, 0
      %s344 = sadd.s32 %s343, 1
      %s345 = scalar_select %p342, %s343, %s344
      %p348 = pneg %p342
      %p349 = scmp.eq.s32.totalorder %s24, 1
      %p350 = por %p348, %p349
      %p351 = scmp.ne.s32.totalorder %s343, %s346
      %p352 = scmp.eq.s32.totalorder %s24, 0
      %p353 = por %p351, %p352
      %p354 = scmp.ne.s32.totalorder %s343, %s346
      %p355 = scmp.eq.s32.totalorder %s29, 1
      %p356 = por %p354, %p355
      %p357 = scmp.ne.s32.totalorder %s346, %s347
      %p358 = scmp.eq.s32.totalorder %s29, 0
      %p359 = por %p357, %p358
      %p360 = scmp.ne.s32.totalorder %s346, %s347
      %p361 = scmp.eq.s32.totalorder %s30, 1
      %p362 = por %p360, %p361
      %p364 = scmp.ne.s32.totalorder %s347, %s363
      %p365 = scmp.eq.s32.totalorder %s30, 0
      %p366 = por %p364, %p365
      %p367 = scmp.le.s32.totalorder 1, %s24
      %p368 = scmp.lt.s32.totalorder %s24, 3
      %p369 = pnand %p367, %p368
      %p370 = pneg %p369
      // Predicated region
      $region9: #{tpu_custom_call.1} parent=5 // pred_check
        _
      $region10: #{tpu_custom_call.1} parent=5 // pred_check_branch
        %372 = sbr.rel (%p369) target = $region12
      $region11: #{tpu_custom_call.1} parent=5 // pred_region
        %s373 = ssub.s32 %s24, 1
        // Predicated region
        $region13: #{tpu_custom_call.1} parent=11 // pred_check
          %p374 = pneg %p123
        $region14: #{tpu_custom_call.1} parent=11 // pred_check_branch
          %376 = sbr.rel (%p374) target = $region16
        $region15: #{tpu_custom_call.1} parent=11 // pred_region
          %378 = vsyncadd [#allocation3], 0
          %s380 = sshll.u32 %s3, 4
          %s381 = int_to_ptr.hbm [resolvable:$true] %s380
          %s382 = sshll.u32 [#allocation2], 4
          %s383 = int_to_ptr.vmem [resolvable:$true] %s382
          %385 = dma.hbm_to_vmem [thread:$0]  %s381, 16, %s383, [#allocation3]
        $region16: #{tpu_custom_call.1} parent=11 // pred_fallthru
          _
        // Predicated region
        $region17: #{tpu_custom_call.1} parent=11 // pred_check
          %p386 = pneg %p144
        $region18: #{tpu_custom_call.1} parent=11 // pred_check_branch
          %388 = sbr.rel (%p386) target = $region20
        $region19: #{tpu_custom_call.1} parent=11 // pred_region
          %390 = vsyncadd [#allocation5], 0
          %s391 = sshll.u32 %s4, 4
          %s392 = int_to_ptr.hbm [resolvable:$true] %s391
          %s393 = sshll.u32 [#allocation4], 4
          %s394 = int_to_ptr.vmem [resolvable:$true] %s393
          %399 = dma.hbm_to_vmem [thread:$0]  %s392, 256, %s394, [#allocation5], 64, 64, 4
        $region20: #{tpu_custom_call.1} parent=11 // pred_fallthru
          _
        // Predicated region
        $region21: #{tpu_custom_call.1} parent=11 // pred_check
          %p400 = pneg %p165
        $region22: #{tpu_custom_call.1} parent=11 // pred_check_branch
          %402 = sbr.rel (%p400) target = $region24
        $region23: #{tpu_custom_call.1} parent=11 // pred_region
          %404 = vsyncadd [#allocation5], 0
          %s406 = sshll.u32 %s5, 4
          %s407 = int_to_ptr.hbm [resolvable:$true] %s406
          %s408 = sshll.u32 [#allocation6], 4
          %s409 = int_to_ptr.vmem [resolvable:$true] %s408
          %411 = dma.hbm_to_vmem [thread:$0]  %s407, 16, %s409, [#allocation5]
        $region24: #{tpu_custom_call.1} parent=11 // pred_fallthru
          _
        // Predicated region
        $region25: #{tpu_custom_call.1} parent=11 // pred_check
          %p412 = pneg %p186
        $region26: #{tpu_custom_call.1} parent=11 // pred_check_branch
          %414 = sbr.rel (%p412) target = $region28
        $region27: #{tpu_custom_call.1} parent=11 // pred_region
          %416 = vsyncadd [#allocation8], 0
          %s418 = sshll.u32 %s6, 4
          %s419 = int_to_ptr.hbm [resolvable:$true] %s418
          %s420 = sshll.u32 [#allocation7], 4
          %s421 = int_to_ptr.vmem [resolvable:$true] %s420
          %423 = dma.hbm_to_vmem [thread:$0]  %s419, 16, %s421, [#allocation8]
        $region28: #{tpu_custom_call.1} parent=11 // pred_fallthru
          _
        // Predicated region
        $region29: #{tpu_custom_call.1} parent=11 // pred_check
          %p424 = pneg %p207
        $region30: #{tpu_custom_call.1} parent=11 // pred_check_branch
          %426 = sbr.rel (%p424) target = $region32
        $region31: #{tpu_custom_call.1} parent=11 // pred_region
          %428 = vsyncadd [#allocation8], 0
          %s430 = sshll.u32 %s7, 4
          %s431 = int_to_ptr.hbm [resolvable:$true] %s430
          %s432 = sshll.u32 [#allocation9], 4
          %s433 = int_to_ptr.vmem [resolvable:$true] %s432
          %435 = dma.hbm_to_vmem [thread:$0]  %s431, 16, %s433, [#allocation8]
        $region32: #{tpu_custom_call.1} parent=11 // pred_fallthru
          _
        // Predicated region
        $region33: #{tpu_custom_call.1} parent=11 // pred_check
          %p436 = pneg %p228
        $region34: #{tpu_custom_call.1} parent=11 // pred_check_branch
          %438 = sbr.rel (%p436) target = $region36
        $region35: #{tpu_custom_call.1} parent=11 // pred_region
          %440 = vsyncadd [#allocation11], 0
          %s441 = sshll.u32 %s8, 4
          %s442 = int_to_ptr.hbm [resolvable:$true] %s441
          %s443 = sshll.u32 [#allocation10], 4
          %s444 = int_to_ptr.vmem [resolvable:$true] %s443
          %449 = dma.hbm_to_vmem [thread:$0]  %s442, 256, %s444, [#allocation11], 64, 64, 4
        $region36: #{tpu_custom_call.1} parent=11 // pred_fallthru
          _
        // Predicated region
        $region37: #{tpu_custom_call.1} parent=11 // pred_check
          %p450 = pneg %p249
        $region38: #{tpu_custom_call.1} parent=11 // pred_check_branch
          %452 = sbr.rel (%p450) target = $region40
        $region39: #{tpu_custom_call.1} parent=11 // pred_region
          _
        $region40: #{tpu_custom_call.1} parent=11 // pred_fallthru
          _
        // Predicated region
        $region41: #{tpu_custom_call.1} parent=11 // pred_check
          %p453 = pneg %p270
        $region42: #{tpu_custom_call.1} parent=11 // pred_check_branch
          %455 = sbr.rel (%p453) target = $region44
        $region43: #{tpu_custom_call.1} parent=11 // pred_region
          _
        $region44: #{tpu_custom_call.1} parent=11 // pred_fallthru
          _
        // Predicated region
        $region45: #{tpu_custom_call.1} parent=11 // pred_check
          %p456 = pneg %p291
        $region46: #{tpu_custom_call.1} parent=11 // pred_check_branch
          %458 = sbr.rel (%p456) target = $region48
        $region47: #{tpu_custom_call.1} parent=11 // pred_region
          _
        $region48: #{tpu_custom_call.1} parent=11 // pred_fallthru
          _
        // Predicated region
        $region49: #{tpu_custom_call.1} parent=11 // pred_check
          %p459 = pneg %p312
        $region50: #{tpu_custom_call.1} parent=11 // pred_check_branch
          %461 = sbr.rel (%p459) target = $region52
        $region51: #{tpu_custom_call.1} parent=11 // pred_region
          _
        $region52: #{tpu_custom_call.1} parent=11 // pred_fallthru
          _
        // Predicated region
        $region53: #{tpu_custom_call.1} parent=11 // pred_check
          %p462 = pneg %p333
        $region54: #{tpu_custom_call.1} parent=11 // pred_check_branch
          %464 = sbr.rel (%p462) target = $region56
        $region55: #{tpu_custom_call.1} parent=11 // pred_region
          _
        $region56: #{tpu_custom_call.1} parent=11 // pred_fallthru
          _
      $region12: #{tpu_custom_call.1} parent=5 // pred_fallthru
        _
      %p465 = scmp.lt.s32.totalorder %s24, 2
      // Predicated region
      $region57: #{tpu_custom_call.1} parent=5 // pred_check
        %p466 = pneg %p465
      $region58: #{tpu_custom_call.1} parent=5 // pred_check_branch
        %468 = sbr.rel (%p466) target = $region60
      $region59: #{tpu_custom_call.1} parent=5 // pred_region
        // Predicated region
        $region61: #{tpu_custom_call.1} parent=59 // pred_check
          %p469 = pneg %p44
        $region62: #{tpu_custom_call.1} parent=59 // pred_check_branch
          %471 = sbr.rel (%p469) target = $region64
        $region63: #{tpu_custom_call.1} parent=59 // pred_region
          %s472 = smul.u32 4, %s24
          %p473 = scmp.lt.s32.totalorder %s472, 7
          %s474 = scalar_select %p473, %s472, 7
          %s475 = smul.addr %s474, 4
          %s476 = scalar_lea.vmem %s0, %s475
          %s477 = smul.u32 4, %s24
        $region64: #{tpu_custom_call.1} parent=59 // pred_fallthru
          _
        // Predicated region
        $region65: #{tpu_custom_call.1} parent=59 // pred_check
          %p478 = pneg %p70
        $region66: #{tpu_custom_call.1} parent=59 // pred_check_branch
          %480 = sbr.rel (%p478) target = $region68
        $region67: #{tpu_custom_call.1} parent=59 // pred_region
          %s481 = smul.u32 4, %s24
          %p482 = scmp.lt.s32.totalorder %s481, 7
          %s483 = scalar_select %p482, %s481, 7
          %s484 = smul.addr %s483, 2
          %s485 = scalar_lea.vmem %s1, %s484
          %s486 = smul.u32 4, %s24
        $region68: #{tpu_custom_call.1} parent=59 // pred_fallthru
          _
        // Predicated region
        $region69: #{tpu_custom_call.1} parent=59 // pred_check
          %p487 = pneg %p96
        $region70: #{tpu_custom_call.1} parent=59 // pred_check_branch
          %489 = sbr.rel (%p487) target = $region72
        $region71: #{tpu_custom_call.1} parent=59 // pred_region
          %s490 = smul.u32 4, %s24
          %p491 = scmp.lt.s32.totalorder %s490, 7
          %s492 = scalar_select %p491, %s490, 7
          %s493 = smul.addr %s492, 2
          %s494 = scalar_lea.vmem %s2, %s493
          %s495 = smul.u32 4, %s24
        $region72: #{tpu_custom_call.1} parent=59 // pred_fallthru
          _
      $region60: #{tpu_custom_call.1} parent=5 // pred_fallthru
        _
      %p496 = scmp.le.s32.totalorder 1, %s24
      %p497 = scmp.lt.s32.totalorder %s24, 3
      %p498 = pnand %p496, %p497
      %p499 = pneg %p498
      // Predicated region
      $region73: #{tpu_custom_call.1} parent=5 // pred_check
        _
      $region74: #{tpu_custom_call.1} parent=5 // pred_check_branch
        %501 = sbr.rel (%p498) target = $region76
      $region75: #{tpu_custom_call.1} parent=5 // pred_region
        %s502 = ssub.s32 %s24, 1
        // Predicated region
        $region77: #{tpu_custom_call.1} parent=75 // pred_check
          %p503 = pneg %p123
        $region78: #{tpu_custom_call.1} parent=75 // pred_check_branch
          %505 = sbr.rel (%p503) target = $region80
        $region79: #{tpu_custom_call.1} parent=75 // pred_region
          %507 = dma.done [#allocation3], 16
        $region80: #{tpu_custom_call.1} parent=75 // pred_fallthru
          _
        // Predicated region
        $region81: #{tpu_custom_call.1} parent=75 // pred_check
          %p508 = pneg %p144
        $region82: #{tpu_custom_call.1} parent=75 // pred_check_branch
          %510 = sbr.rel (%p508) target = $region84
        $region83: #{tpu_custom_call.1} parent=75 // pred_region
          %512 = dma.done [#allocation5], 256
        $region84: #{tpu_custom_call.1} parent=75 // pred_fallthru
          _
        // Predicated region
        $region85: #{tpu_custom_call.1} parent=75 // pred_check
          %p513 = pneg %p165
        $region86: #{tpu_custom_call.1} parent=75 // pred_check_branch
          %515 = sbr.rel (%p513) target = $region88
        $region87: #{tpu_custom_call.1} parent=75 // pred_region
          %517 = dma.done [#allocation5], 16
        $region88: #{tpu_custom_call.1} parent=75 // pred_fallthru
          _
        // Predicated region
        $region89: #{tpu_custom_call.1} parent=75 // pred_check
          %p518 = pneg %p186
        $region90: #{tpu_custom_call.1} parent=75 // pred_check_branch
          %520 = sbr.rel (%p518) target = $region92
        $region91: #{tpu_custom_call.1} parent=75 // pred_region
          %522 = dma.done [#allocation8], 16
        $region92: #{tpu_custom_call.1} parent=75 // pred_fallthru
          _
        // Predicated region
        $region93: #{tpu_custom_call.1} parent=75 // pred_check
          %p523 = pneg %p207
        $region94: #{tpu_custom_call.1} parent=75 // pred_check_branch
          %525 = sbr.rel (%p523) target = $region96
        $region95: #{tpu_custom_call.1} parent=75 // pred_region
          %527 = dma.done [#allocation8], 16
        $region96: #{tpu_custom_call.1} parent=75 // pred_fallthru
          _
        // Predicated region
        $region97: #{tpu_custom_call.1} parent=75 // pred_check
          %p528 = pneg %p228
        $region98: #{tpu_custom_call.1} parent=75 // pred_check_branch
          %530 = sbr.rel (%p528) target = $region100
        $region99: #{tpu_custom_call.1} parent=75 // pred_region
          %532 = dma.done [#allocation11], 256
        $region100: #{tpu_custom_call.1} parent=75 // pred_fallthru
          _
        %s533 = smul.u32 4, %s29
        %p534 = scmp.lt.s32.totalorder %s533, 7
        %s535 = scalar_select %p534, %s533, 7
        %s536 = smul.addr %s535, 4
        %s537 = scalar_lea.vmem %s0, %s536
        %p538 = pneg %p50
        %p539 = pneg %p47
        %s540 = smul.u32 4, %s29
        %p541 = scmp.lt.s32.totalorder %s540, 7
        %s542 = scalar_select %p541, %s540, 7
        %s543 = smul.addr %s542, 2
        %s544 = scalar_lea.vmem %s1, %s543
        %p545 = pneg %p76
        %p546 = pneg %p73
        %s547 = smul.u32 4, %s29
        %p548 = scmp.lt.s32.totalorder %s547, 7
        %s549 = scalar_select %p548, %s547, 7
        %s550 = smul.addr %s549, 2
        %s551 = scalar_lea.vmem %s2, %s550
        %p552 = pneg %p102
        %p553 = pneg %p99
        %p554 = pneg %p123
        %p555 = pneg %p120
        %p556 = pneg %p144
        %p557 = pneg %p141
        %p558 = pneg %p165
        %p559 = pneg %p162
        %p560 = pneg %p186
        %p561 = pneg %p183
        %p562 = pneg %p207
        %p563 = pneg %p204
        %p564 = pneg %p228
        %p565 = pneg %p225
        %p566 = pneg %p249
        %p567 = pneg %p246
        %p568 = pneg %p270
        %p569 = pneg %p267
        %p570 = pneg %p291
        %p571 = pneg %p288
        %p572 = pneg %p312
        %p573 = pneg %p309
        %p574 = pneg %p333
        %p575 = pneg %p330
        %p576 = pneg %p359
        %p577 = pneg %p356
        %s578 = smul.u32 4, %s29
        %p579 = scmp.lt.s32.totalorder %s578, 7
        %s580 = scalar_select %p579, %s578, 7
        %s581 = smul.addr %s580, 8
        %s582 = scalar_lea.vmem %s14, %s581
        %s583 = smul.u32 4, %s29
        %p584 = scmp.lt.s32.totalorder %s583, 7
        %s585 = scalar_select %p584, %s583, 7
        %s586 = smul.addr %s585, 4
        %s587 = scalar_lea.vmem %s0, %s586
        %s588 = smul.u32 4, %s29
        %s589 = smul.u32 4, %s29
        %p590 = scmp.lt.s32.totalorder %s589, 7
        %s591 = scalar_select %p590, %s589, 7
        %s592 = smul.addr %s591, 2
        %s593 = scalar_lea.vmem %s1, %s592
        %s594 = smul.u32 4, %s29
        %s595 = smul.u32 4, %s29
        %p596 = scmp.lt.s32.totalorder %s595, 7
        %s597 = scalar_select %p596, %s595, 7
        %s598 = smul.addr %s597, 2
        %s599 = scalar_lea.vmem %s2, %s598
        %s600 = smul.u32 4, %s29
        %s601 = smul.u32 4, %s29
        %p602 = scmp.lt.s32.totalorder %s601, 7
        %s603 = scalar_select %p602, %s601, 7
        %s604 = smul.addr %s603, 8
        %s605 = scalar_lea.vmem %s14, %s604
        %s606 = smul.u32 4, %s29
        %v608 = vld [vmem:[%s587] sm:$0xf]
        %v609 = vld [vmem:[%s587 + $0x4] sm:$0xf]
        %v610 = vld [vmem:[%s587 + $0x8] sm:$0xf]
        %v611 = vld [vmem:[%s587 + $0xc] sm:$0xf]
        %v612 = vld [vmem:[%s593] sm:$0x3]
        %v613 = vld [vmem:[%s593 + $0x2] sm:$0x3]
        %v614 = vld [vmem:[%s593 + $0x4] sm:$0x3]
        %v615 = vld [vmem:[%s593 + $0x6] sm:$0x3]
        %v616 = vunpack.c.0.s8 %v612
        %v617 = vunpack.c.0.s8 %v613
        %v618 = vunpack.c.0.s8 %v614
        %v619 = vunpack.c.0.s8 %v615
        %v620 = vcvt.s32.f32 %v616
        %v621 = vcvt.s32.f32 %v617
        %v622 = vcvt.s32.f32 %v618
        %v623 = vcvt.s32.f32 %v619
        %v624 = vld [vmem:[%s599] sm:$0x3]
        %v625 = vld [vmem:[%s599 + $0x2] sm:$0x3]
        %v626 = vld [vmem:[%s599 + $0x4] sm:$0x3]
        %v627 = vld [vmem:[%s599 + $0x6] sm:$0x3]
        %v628 = vunpack.c.0.s8 %v624
        %v629 = vunpack.c.0.s8 %v625
        %v630 = vunpack.c.0.s8 %v626
        %v631 = vunpack.c.0.s8 %v627
        %v632 = vcvt.s32.f32 %v628
        %v633 = vcvt.s32.f32 %v629
        %v634 = vcvt.s32.f32 %v630
        %v635 = vcvt.s32.f32 %v631
        %v636 = vld [vmem:[#allocation4] sm:$0xf]
        %v637 = vld [vmem:[#allocation4 + $0x4] sm:$0xf]
        %v638 = vld [vmem:[#allocation4 + $0x8] sm:$0xf]
        %v639 = vld [vmem:[#allocation4 + $0xc] sm:$0xf]
        %v640 = vld [vmem:[#allocation6] sm:$0x1]
        %v641 = vld [vmem:[#allocation7] sm:$0x1]
        %v642 = vld [vmem:[#allocation9] sm:$0x1]
        %v647 = vunpack.c.l.b16 %v608
        %v648 = vunpack.c.l.b16 %v609
        %v649 = vunpack.c.l.b16 %v610
        %v650 = vunpack.c.l.b16 %v611
        %v651 = vpack.c.b16 %v648, %v647
        %v652 = vpack.c.b16 %v650, %v649
        %v657 = vunpack.c.l.b16 %v636
        %v658 = vunpack.c.l.b16 %v637
        %v659 = vunpack.c.l.b16 %v638
        %v660 = vunpack.c.l.b16 %v639
        %v661 = vpack.c.b16 %v658, %v657
        %v662 = vpack.c.b16 %v660, %v659
        %vm665 = vcmask 261120
        %v667 = vsel %vm665, %v651, 0
        %v670 = vsel %vm665, %v652, 0
        %672 = vmatpush.bf16.msra.mxu0 0
        %673 = vmatpush.bf16.msra.mxu0 0
        %674 = vmatpush.bf16.msra.mxu0 0
        %675 = vmatpush.bf16.msra.mxu0 0
        %676 = vmatpush.bf16.msra.mxu0 0
        %677 = vmatpush.bf16.msra.mxu0 0
        %678 = vmatpush.bf16.msra.mxu0 %v662
        %679 = vmatpush.bf16.msra.mxu0 %v661
        %680 = vmatmul.bf16.gmra.mxu0 %v667
        %v681 = vpop.f32.mrf.mxu0
        %v682 = vadd.f32 0.0, %v681
        %v683 = vpop.f32.mrf.mxu0
        %v684 = vadd.f32 0.0, %v683
        %685 = vmatmul.bf16.gmra.mxu0 %v670
        %v686 = vpop.f32.mrf.mxu0
        %v687 = vadd.f32 0.0, %v686
        %v688 = vpop.f32.mrf.mxu0
        %v689 = vadd.f32 0.0, %v688
        %690 = vdwg.mxu0
        %v692 = vperm.slane %v640, 0
        %v694 = vadd.f32 %v682, %v692
        %v695 = vadd.f32 %v684, %v692
        %v696 = vadd.f32 %v687, %v692
        %v697 = vadd.f32 %v689, %v692
        %v699 = vperm.slane %v641, 0
        %v701 = vmul.f32 %v694, %v699
        %v702 = vmul.f32 %v695, %v699
        %v703 = vmul.f32 %v696, %v699
        %v704 = vmul.f32 %v697, %v699
        %v705 = vsel %vm665, %v701, 0.0
        %706 = vadd.xlane.f32.xlu0 %v705
        %v707 = vpop.xlane.xlu0 %706
        %v708 = vsel %vm665, %v702, 0.0
        %709 = vadd.xlane.f32.xlu0 %v708
        %v710 = vpop.xlane.xlu0 %709
        %v711 = vsel %vm665, %v703, 0.0
        %712 = vadd.xlane.f32.xlu0 %v711
        %v713 = vpop.xlane.xlu0 %712
        %v714 = vsel %vm665, %v704, 0.0
        %715 = vadd.xlane.f32.xlu0 %v714
        %v716 = vpop.xlane.xlu0 %715
        %v718 = vperm.slane %v642, 0
        %v720 = vmul.f32 %v694, %v718
        %v721 = vmul.f32 %v695, %v718
        %v722 = vmul.f32 %v696, %v718
        %v723 = vmul.f32 %v697, %v718
        %v724 = vsel %vm665, %v720, 0.0
        %725 = vadd.xlane.f32.xlu0 %v724
        %v726 = vpop.xlane.xlu0 %725
        %v727 = vsel %vm665, %v721, 0.0
        %728 = vadd.xlane.f32.xlu0 %v727
        %v729 = vpop.xlane.xlu0 %728
        %v730 = vsel %vm665, %v722, 0.0
        %731 = vadd.xlane.f32.xlu0 %v730
        %v732 = vpop.xlane.xlu0 %731
        %v733 = vsel %vm665, %v723, 0.0
        %734 = vadd.xlane.f32.xlu0 %v733
        %v735 = vpop.xlane.xlu0 %734
        %v740 = vlaneseq
        %v741 = vand.u32 %v740, 127
        %v742 = vperm.slane %v726, %v741
        %v743 = vperm.slane %v729, %v741
        %v744 = vperm.slane %v732, %v741
        %v745 = vperm.slane %v735, %v741
        %vm746 = vcmask 1041409
        %vm747 = vcmask 1042434
        %v748 = vsel %vm747, %v742, %v742
        %vm749 = vcmask 1043459
        %v750 = vsel %vm749, %v742, %v748
        %vm751 = vcmask 1044484
        %v752 = vsel %vm751, %v742, %v750
        %vm753 = vcmask 1045509
        %v754 = vsel %vm753, %v742, %v752
        %vm755 = vcmask 1046534
        %v756 = vsel %vm755, %v742, %v754
        %vm757 = vcmask 1047559
        %v758 = vsel %vm757, %v742, %v756
        %v759 = vsel %vm747, %v743, %v743
        %v760 = vsel %vm749, %v743, %v759
        %v761 = vsel %vm751, %v743, %v760
        %v762 = vsel %vm753, %v743, %v761
        %v763 = vsel %vm755, %v743, %v762
        %v764 = vsel %vm757, %v743, %v763
        %v765 = vsel %vm747, %v744, %v744
        %v766 = vsel %vm749, %v744, %v765
        %v767 = vsel %vm751, %v744, %v766
        %v768 = vsel %vm753, %v744, %v767
        %v769 = vsel %vm755, %v744, %v768
        %v770 = vsel %vm757, %v744, %v769
        %v771 = vsel %vm747, %v745, %v745
        %v772 = vsel %vm749, %v745, %v771
        %v773 = vsel %vm751, %v745, %v772
        %v774 = vsel %vm753, %v745, %v773
        %v775 = vsel %vm755, %v745, %v774
        %v776 = vsel %vm757, %v745, %v775
        %v781 = vadd.f32 %v707, %v758
        %v782 = vadd.f32 %v710, %v764
        %v783 = vadd.f32 %v713, %v770
        %v784 = vadd.f32 %v716, %v776
        %vm785 = vcmp.ge.f32.partialorder %v781, 0.0
        %vm786 = vcmp.ge.f32.partialorder %v782, 0.0
        %vm787 = vcmp.ge.f32.partialorder %v783, 0.0
        %vm788 = vcmp.ge.f32.partialorder %v784, 0.0
        %v789 = vmul.f32 %v781, 0.2
        %v790 = vmul.f32 %v782, 0.2
        %v791 = vmul.f32 %v783, 0.2
        %v792 = vmul.f32 %v784, 0.2
        %v793 = vsel %vm785, %v781, %v789
        %v794 = vsel %vm786, %v782, %v790
        %v795 = vsel %vm787, %v783, %v791
        %v796 = vsel %vm788, %v784, %v792
        %vm797 = vcmp.gt.f32.partialorder %v620, 0.0
        %vm798 = vcmp.gt.f32.partialorder %v621, 0.0
        %vm799 = vcmp.gt.f32.partialorder %v622, 0.0
        %vm800 = vcmp.gt.f32.partialorder %v623, 0.0
        %v801 = vsel %vm797, %v793, -1e+30
        %v802 = vsel %vm798, %v794, -1e+30
        %v803 = vsel %vm799, %v795, -1e+30
        %v804 = vsel %vm800, %v796, -1e+30
        %vm805 = vcmask 64512
        %v806 = vsel %vm805, %v801, -inf
        %807 = vmax.xlane.f32.xlu0 %v806
        %v808 = vpop.xlane.xlu0 %807
        %v809 = vsel %vm805, %v802, -inf
        %810 = vmax.xlane.f32.xlu0 %v809
        %v811 = vpop.xlane.xlu0 %810
        %v812 = vsel %vm805, %v803, -inf
        %813 = vmax.xlane.f32.xlu0 %v812
        %v814 = vpop.xlane.xlu0 %813
        %v815 = vsel %vm805, %v804, -inf
        %816 = vmax.xlane.f32.xlu0 %v815
        %v817 = vpop.xlane.xlu0 %816
        %v818 = vsub.f32 %v801, %v808
        %v819 = vsub.f32 %v802, %v811
        %v820 = vsub.f32 %v803, %v814
        %v821 = vsub.f32 %v804, %v817
        %v822 = vmul.f32 %v818, 1.442695
        %v823 = vpow.pop %v822
        %v824 = vmul.f32 %v819, 1.442695
        %v825 = vpow.pop %v824
        %v826 = vmul.f32 %v820, 1.442695
        %v827 = vpow.pop %v826
        %v828 = vmul.f32 %v821, 1.442695
        %v829 = vpow.pop %v828
        %v830 = vmul.f32 %v823, %v620
        %v831 = vmul.f32 %v825, %v621
        %v832 = vmul.f32 %v827, %v622
        %v833 = vmul.f32 %v829, %v623
        %v834 = vsel %vm805, %v830, 0.0
        %835 = vadd.xlane.f32.xlu0 %v834
        %v836 = vpop.xlane.xlu0 %835
        %v837 = vsel %vm805, %v831, 0.0
        %838 = vadd.xlane.f32.xlu0 %v837
        %v839 = vpop.xlane.xlu0 %838
        %v840 = vsel %vm805, %v832, 0.0
        %841 = vadd.xlane.f32.xlu0 %v840
        %v842 = vpop.xlane.xlu0 %841
        %v843 = vsel %vm805, %v833, 0.0
        %844 = vadd.xlane.f32.xlu0 %v843
        %v845 = vpop.xlane.xlu0 %844
        %v846 = vmax.f32 %v836, 1e-30
        %v847 = vmax.f32 %v839, 1e-30
        %v848 = vmax.f32 %v842, 1e-30
        %v849 = vmax.f32 %v845, 1e-30
        %v850 = vrcp.pop %v846
        %v851 = vrcp.pop %v847
        %v852 = vrcp.pop %v848
        %v853 = vrcp.pop %v849
        %v854 = vmul.f32 %v830, %v850
        %v855 = vmul.f32 %v831, %v851
        %v856 = vmul.f32 %v832, %v852
        %v857 = vmul.f32 %v833, %v853
        %v858 = vsel %vm805, %v620, 0.0
        %859 = vadd.xlane.f32.xlu0 %v858
        %v860 = vpop.xlane.xlu0 %859
        %v861 = vsel %vm805, %v621, 0.0
        %862 = vadd.xlane.f32.xlu0 %v861
        %v863 = vpop.xlane.xlu0 %862
        %v864 = vsel %vm805, %v622, 0.0
        %865 = vadd.xlane.f32.xlu0 %v864
        %v866 = vpop.xlane.xlu0 %865
        %v867 = vsel %vm805, %v623, 0.0
        %868 = vadd.xlane.f32.xlu0 %v867
        %v869 = vpop.xlane.xlu0 %868
        %vm870 = vcmp.gt.f32.partialorder %v860, 0.0
        %vm871 = vcmp.gt.f32.partialorder %v863, 0.0
        %vm872 = vcmp.gt.f32.partialorder %v866, 0.0
        %vm873 = vcmp.gt.f32.partialorder %v869, 0.0
        %v874 = vsel %vm870, 1, 0
        %v875 = vsel %vm871, 1, 0
        %v876 = vsel %vm872, 1, 0
        %v877 = vsel %vm873, 1, 0
        %v878 = vcvt.s32.f32 %v874
        %v879 = vcvt.s32.f32 %v875
        %v880 = vcvt.s32.f32 %v876
        %v881 = vcvt.s32.f32 %v877
        %v882 = vpack.c.bf16 %v854, %v854
        %v883 = vpack.c.bf16 %v855, %v855
        %v884 = vpack.c.bf16 %v856, %v856
        %v885 = vpack.c.bf16 %v857, %v857
        %v886 = vpack.c.bf16 %v694, %v694
        %v887 = vpack.c.bf16 %v695, %v695
        %v888 = vpack.c.bf16 %v696, %v696
        %v889 = vpack.c.bf16 %v697, %v697
        %v891 = vsel %vm805, %v882, 0
        %vm893 = vcmask 1043456
        %v895 = vsel %vm893, %v886, 0
        %897 = vmatpush.bf16.msra.mxu0 0
        %898 = vmatpush.bf16.msra.mxu0 0
        %899 = vmatpush.bf16.msra.mxu0 0
        %900 = vmatpush.bf16.msra.mxu0 0
        %901 = vmatpush.bf16.msra.mxu0 0
        %902 = vmatpush.bf16.msra.mxu0 0
        %903 = vmatpush.bf16.msra.mxu0 0
        %904 = vmatpush.bf16.msra.mxu0 %v895
        %905 = vmatmul.bf16.gmra.mxu0 %v891
        %v906 = vpop.f32.mrf.mxu0
        %v907 = vadd.f32 0.0, %v906
        %v908 = vpop.f32.mrf.mxu0
        %909 = vdwg.mxu0
        %v911 = vsel %vm805, %v883, 0
        %v914 = vsel %vm893, %v887, 0
        %916 = vmatpush.bf16.msra.mxu0 0
        %917 = vmatpush.bf16.msra.mxu0 0
        %918 = vmatpush.bf16.msra.mxu0 0
        %919 = vmatpush.bf16.msra.mxu0 0
        %920 = vmatpush.bf16.msra.mxu0 0
        %921 = vmatpush.bf16.msra.mxu0 0
        %922 = vmatpush.bf16.msra.mxu0 0
        %923 = vmatpush.bf16.msra.mxu0 %v914
        %924 = vmatmul.bf16.gmra.mxu0 %v911
        %v925 = vpop.f32.mrf.mxu0
        %v926 = vadd.f32 0.0, %v925
        %v927 = vpop.f32.mrf.mxu0
        %928 = vdwg.mxu0
        %v930 = vsel %vm805, %v884, 0
        %v933 = vsel %vm893, %v888, 0
        %935 = vmatpush.bf16.msra.mxu0 0
        %936 = vmatpush.bf16.msra.mxu0 0
        %937 = vmatpush.bf16.msra.mxu0 0
        %938 = vmatpush.bf16.msra.mxu0 0
        %939 = vmatpush.bf16.msra.mxu0 0
        %940 = vmatpush.bf16.msra.mxu0 0
        %941 = vmatpush.bf16.msra.mxu0 0
        %942 = vmatpush.bf16.msra.mxu0 %v933
        %943 = vmatmul.bf16.gmra.mxu0 %v930
        %v944 = vpop.f32.mrf.mxu0
        %v945 = vadd.f32 0.0, %v944
        %v946 = vpop.f32.mrf.mxu0
        %947 = vdwg.mxu0
        %v949 = vsel %vm805, %v885, 0
        %v952 = vsel %vm893, %v889, 0
        %954 = vmatpush.bf16.msra.mxu0 0
        %955 = vmatpush.bf16.msra.mxu0 0
        %956 = vmatpush.bf16.msra.mxu0 0
        %957 = vmatpush.bf16.msra.mxu0 0
        %958 = vmatpush.bf16.msra.mxu0 0
        %959 = vmatpush.bf16.msra.mxu0 0
        %960 = vmatpush.bf16.msra.mxu0 0
        %961 = vmatpush.bf16.msra.mxu0 %v952
        %962 = vmatmul.bf16.gmra.mxu0 %v949
        %v963 = vpop.f32.mrf.mxu0
        %v964 = vadd.f32 0.0, %v963
        %v965 = vpop.f32.mrf.mxu0
        %966 = vdwg.mxu0
        %v967 = vunpack.c.l.bf16 %v608
        %v968 = vunpack.c.l.bf16 %v609
        %v969 = vunpack.c.l.bf16 %v610
        %v970 = vunpack.c.l.bf16 %v611
        %v971 = vmul.f32 %v878, %v907
        %v972 = vmul.f32 %v879, %v926
        %v973 = vmul.f32 %v880, %v945
        %v974 = vmul.f32 %v881, %v964
        %v975 = vadd.f32 %v967, %v971
        %v976 = vadd.f32 %v968, %v972
        %v977 = vadd.f32 %v969, %v973
        %v978 = vadd.f32 %v970, %v974
        %v979 = vld [vmem:[#allocation10] sm:$0xf]
        %v980 = vld [vmem:[#allocation10 + $0x4] sm:$0xf]
        %v981 = vld [vmem:[#allocation10 + $0x8] sm:$0xf]
        %v982 = vld [vmem:[#allocation10 + $0xc] sm:$0xf]
        %v983 = vld [vmem:[%s9] sm:$0xf]
        %v984 = vld [vmem:[%s9 + $0x4] sm:$0xf]
        %v985 = vld [vmem:[%s10] sm:$0x1]
        %v986 = vld [vmem:[%s11] sm:$0x1]
        %v988 = vsel %vm805, %v632, 0
        %990 = vmatpush.msra.mxu0 0.0
        %991 = vmatpush.msra.mxu0 0.0
        %992 = vmatpush.msra.mxu0 0.0
        %993 = vmatpush.msra.mxu0 0.0
        %994 = vmatpush.msra.mxu0 0.0
        %995 = vmatpush.msra.mxu0 0.0
        %996 = vmatpush.msra.mxu0 0.0
        %997 = vmatpush.msra.mxu0 0.0
        %998 = vmatpush.msra.mxu0 0.0
        %999 = vmatpush.msra.mxu0 0.0
        %1000 = vmatpush.msra.mxu0 0.0
        %1001 = vmatpush.msra.mxu0 0.0
        %1002 = vmatpush.msra.mxu0 0.0
        %1003 = vmatpush.msra.mxu0 0.0
        %1004 = vmatpush.msra.mxu0 0.0
        %1005 = vmatpush.msra.mxu0 %v975
        %1006 = vmatmul.f32.gmra.mxu0 %v988
        %v1007 = vpop.f32.mrf.mxu0
        %v1008 = vadd.f32 0.0, %v1007
        %1009 = vdwg.mxu0
        %v1011 = vsel %vm805, %v633, 0
        %1013 = vmatpush.msra.mxu0 0.0
        %1014 = vmatpush.msra.mxu0 0.0
        %1015 = vmatpush.msra.mxu0 0.0
        %1016 = vmatpush.msra.mxu0 0.0
        %1017 = vmatpush.msra.mxu0 0.0
        %1018 = vmatpush.msra.mxu0 0.0
        %1019 = vmatpush.msra.mxu0 0.0
        %1020 = vmatpush.msra.mxu0 0.0
        %1021 = vmatpush.msra.mxu0 0.0
        %1022 = vmatpush.msra.mxu0 0.0
        %1023 = vmatpush.msra.mxu0 0.0
        %1024 = vmatpush.msra.mxu0 0.0
        %1025 = vmatpush.msra.mxu0 0.0
        %1026 = vmatpush.msra.mxu0 0.0
        %1027 = vmatpush.msra.mxu0 0.0
        %1028 = vmatpush.msra.mxu0 %v976
        %1029 = vmatmul.f32.gmra.mxu0 %v1011
        %v1030 = vpop.f32.mrf.mxu0
        %v1031 = vadd.f32 0.0, %v1030
        %1032 = vdwg.mxu0
        %v1034 = vsel %vm805, %v634, 0
        %1036 = vmatpush.msra.mxu0 0.0
        %1037 = vmatpush.msra.mxu0 0.0
        %1038 = vmatpush.msra.mxu0 0.0
        %1039 = vmatpush.msra.mxu0 0.0
        %1040 = vmatpush.msra.mxu0 0.0
        %1041 = vmatpush.msra.mxu0 0.0
        %1042 = vmatpush.msra.mxu0 0.0
        %1043 = vmatpush.msra.mxu0 0.0
        %1044 = vmatpush.msra.mxu0 0.0
        %1045 = vmatpush.msra.mxu0 0.0
        %1046 = vmatpush.msra.mxu0 0.0
        %1047 = vmatpush.msra.mxu0 0.0
        %1048 = vmatpush.msra.mxu0 0.0
        %1049 = vmatpush.msra.mxu0 0.0
        %1050 = vmatpush.msra.mxu0 0.0
        %1051 = vmatpush.msra.mxu0 %v977
        %1052 = vmatmul.f32.gmra.mxu0 %v1034
        %v1053 = vpop.f32.mrf.mxu0
        %v1054 = vadd.f32 0.0, %v1053
        %1055 = vdwg.mxu0
        %v1057 = vsel %vm805, %v635, 0
        %1059 = vmatpush.msra.mxu0 0.0
        %1060 = vmatpush.msra.mxu0 0.0
        %1061 = vmatpush.msra.mxu0 0.0
        %1062 = vmatpush.msra.mxu0 0.0
        %1063 = vmatpush.msra.mxu0 0.0
        %1064 = vmatpush.msra.mxu0 0.0
        %1065 = vmatpush.msra.mxu0 0.0
        %1066 = vmatpush.msra.mxu0 0.0
        %1067 = vmatpush.msra.mxu0 0.0
        %1068 = vmatpush.msra.mxu0 0.0
        %1069 = vmatpush.msra.mxu0 0.0
        %1070 = vmatpush.msra.mxu0 0.0
        %1071 = vmatpush.msra.mxu0 0.0
        %1072 = vmatpush.msra.mxu0 0.0
        %1073 = vmatpush.msra.mxu0 0.0
        %1074 = vmatpush.msra.mxu0 %v978
        %1075 = vmatmul.f32.gmra.mxu0 %v1057
        %v1076 = vpop.f32.mrf.mxu0
        %v1077 = vadd.f32 0.0, %v1076
        %1078 = vdwg.mxu0
        %vm1079 = vcmask 61440
        %v1080 = vsel %vm1079, %v632, 0.0
        %1081 = vadd.xlane.f32.xlu0 %v1080
        %v1082 = vpop.xlane.xlu0 %1081
        %v1083 = vsel %vm1079, %v633, 0.0
        %1084 = vadd.xlane.f32.xlu0 %v1083
        %v1085 = vpop.xlane.xlu0 %1084
        %v1086 = vsel %vm1079, %v634, 0.0
        %1087 = vadd.xlane.f32.xlu0 %v1086
        %v1088 = vpop.xlane.xlu0 %1087
        %v1089 = vsel %vm1079, %v635, 0.0
        %1090 = vadd.xlane.f32.xlu0 %v1089
        %v1091 = vpop.xlane.xlu0 %1090
        %v1092 = vpack.c.bf16 %v1008, %v1008
        %v1093 = vpack.c.bf16 %v1031, %v1031
        %v1094 = vpack.c.bf16 %v1054, %v1054
        %v1095 = vpack.c.bf16 %v1077, %v1077
        %v1097 = vperm.slane %v985, 0
        %v1102 = vrot.slane %v1092, 3
        %v1103 = vrot.slane %v1093, 3
        %v1104 = vrot.slane %v1094, 3
        %v1105 = vrot.slane %v1095, 3
        %vm1106 = vcmask 1040384
        %v1109 = vsel %vm1106, %v1092, %v1102
        %v1111 = vsel %vm746, %v1092, %v1102
        %v1113 = vrot.slane %v1111, 1
        %v1114 = vsel %vm747, %v1092, %v1102
        %v1116 = vrot.slane %v1114, 2
        %v1119 = vsel %vm1106, %v1093, %v1103
        %v1121 = vsel %vm746, %v1093, %v1103
        %v1123 = vrot.slane %v1121, 1
        %v1124 = vsel %vm747, %v1093, %v1103
        %v1126 = vrot.slane %v1124, 2
        %v1129 = vsel %vm1106, %v1094, %v1104
        %v1131 = vsel %vm746, %v1094, %v1104
        %v1133 = vrot.slane %v1131, 1
        %v1134 = vsel %vm747, %v1094, %v1104
        %v1136 = vrot.slane %v1134, 2
        %v1139 = vsel %vm1106, %v1095, %v1105
        %v1141 = vsel %vm746, %v1095, %v1105
        %v1143 = vrot.slane %v1141, 1
        %v1144 = vsel %vm747, %v1095, %v1105
        %v1146 = vrot.slane %v1144, 2
        %v1147 = vunpack.i.l.s16 %v1109
        %v1148 = vunpack.i.h.s16 %v1109
        %v1149 = vunpack.i.l.s16 %v1113
        %v1150 = vunpack.i.h.s16 %v1113
        %v1151 = vunpack.i.l.s16 %v1116
        %v1152 = vunpack.i.l.s16 %v1119
        %v1153 = vunpack.i.h.s16 %v1119
        %v1154 = vunpack.i.l.s16 %v1123
        %v1155 = vunpack.i.h.s16 %v1123
        %v1156 = vunpack.i.l.s16 %v1126
        %v1157 = vunpack.i.l.s16 %v1129
        %v1158 = vunpack.i.h.s16 %v1129
        %v1159 = vunpack.i.l.s16 %v1133
        %v1160 = vunpack.i.h.s16 %v1133
        %v1161 = vunpack.i.l.s16 %v1136
        %v1162 = vunpack.i.l.s16 %v1139
        %v1163 = vunpack.i.h.s16 %v1139
        %v1164 = vunpack.i.l.s16 %v1143
        %v1165 = vunpack.i.h.s16 %v1143
        %v1166 = vunpack.i.l.s16 %v1146
        %v1167 = vrot.slane %v1097, 1
        %v1168 = vrot.slane %v1097, 2
        %v1169 = vrot.slane %v1097, 3
        %v1170 = vrot.slane %v1097, 4
        %v1171 = vpack.i.b16 %v1148, %v1147
        %v1172 = vpack.i.b16 %v1150, %v1149
        %v1173 = vpack.i.b16 %v1152, %v1151
        %v1174 = vpack.i.b16 %v1154, %v1153
        %v1175 = vpack.i.b16 %v1156, %v1155
        %v1176 = vpack.i.b16 %v1158, %v1157
        %v1177 = vpack.i.b16 %v1160, %v1159
        %v1178 = vpack.i.b16 %v1162, %v1161
        %v1179 = vpack.i.b16 %v1164, %v1163
        %v1180 = vpack.i.b16 %v1166, %v1165
        %1182 = vst [vmem:[#allocation1] ss:$9 sm:$0xff] %v1171
        %s1184 = scalar_lea.vmem [#allocation1], 1
        %1185 = vst [vmem:[%s1184] ss:$9 sm:$0xff] %v1172
        %s1187 = scalar_lea.vmem [#allocation1], 2
        %1188 = vst [vmem:[%s1187] ss:$9 sm:$0xff] %v1173
        %s1190 = scalar_lea.vmem [#allocation1], 3
        %1191 = vst [vmem:[%s1190] ss:$9 sm:$0xff] %v1174
        %s1193 = scalar_lea.vmem [#allocation1], 4
        %1194 = vst [vmem:[%s1193] ss:$9 sm:$0xff] %v1175
        %s1196 = scalar_lea.vmem [#allocation1], 5
        %1197 = vst [vmem:[%s1196] ss:$9 sm:$0xff] %v1176
        %s1199 = scalar_lea.vmem [#allocation1], 6
        %1200 = vst [vmem:[%s1199] ss:$9 sm:$0xff] %v1177
        %s1202 = scalar_lea.vmem [#allocation1], 7
        %1203 = vst [vmem:[%s1202] ss:$9 sm:$0xff] %v1178
        %v1204 = vld [vmem:[#allocation1] sm:$0xff]
        %1206 = vst [vmem:[#allocation1] ss:$9 sm:$0xff] %v1179
        %1208 = vst [vmem:[%s1184] ss:$9 sm:$0xff] %v1180
        %v1209 = vld [vmem:[#allocation1] sm:$0xff]
        %v1214 = vunpack.c.l.b16 %v979
        %v1215 = vunpack.c.l.b16 %v980
        %v1216 = vunpack.c.l.b16 %v981
        %v1217 = vunpack.c.l.b16 %v982
        %v1218 = vpack.c.b16 %v1215, %v1214
        %v1219 = vpack.c.b16 %v1217, %v1216
        %1222 = vst [vmem:[#allocation1] ss:$9 sm:$0xff] %v1097
        %s1223 = scalar_lea.vmem [#allocation1], 1
        %1224 = vst [vmem:[%s1223] ss:$9 sm:$0xff] %v1167
        %s1225 = scalar_lea.vmem [#allocation1], 2
        %1226 = vst [vmem:[%s1225] ss:$9 sm:$0xff] %v1168
        %s1227 = scalar_lea.vmem [#allocation1], 3
        %1228 = vst [vmem:[%s1227] ss:$9 sm:$0xff] %v1169
        %s1229 = scalar_lea.vmem [#allocation1], 4
        %1230 = vst [vmem:[%s1229] ss:$9 sm:$0xff] %v1170
        %s1231 = scalar_lea.vmem [#allocation1], 5
        %1232 = vst [vmem:[%s1231] ss:$9 sm:$0xff] %v1097
        %s1233 = scalar_lea.vmem [#allocation1], 6
        %1234 = vst [vmem:[%s1233] ss:$9 sm:$0xff] %v1167
        %s1235 = scalar_lea.vmem [#allocation1], 7
        %1236 = vst [vmem:[%s1235] ss:$9 sm:$0xff] %v1168
        %v1237 = vld [vmem:[#allocation1] sm:$0xff]
        %1238 = vst [vmem:[#allocation1] ss:$9 sm:$0xff] %v1169
        %1239 = vst [vmem:[%s1223] ss:$9 sm:$0xff] %v1170
        %1240 = vst [vmem:[%s1225] ss:$9 sm:$0xff] %v1097
        %1241 = vst [vmem:[%s1227] ss:$9 sm:$0xff] %v1167
        %1242 = vst [vmem:[%s1229] ss:$9 sm:$0xff] %v1168
        %1243 = vst [vmem:[%s1231] ss:$9 sm:$0xff] %v1169
        %1244 = vst [vmem:[%s1233] ss:$9 sm:$0xff] %v1170
        %1245 = vst [vmem:[%s1235] ss:$9 sm:$0xff] %v1097
        %v1246 = vld [vmem:[#allocation1] sm:$0xff]
        %1247 = vst [vmem:[#allocation1] ss:$9 sm:$0xff] %v1167
        %1248 = vst [vmem:[%s1223] ss:$9 sm:$0xff] %v1168
        %1249 = vst [vmem:[%s1225] ss:$9 sm:$0xff] %v1169
        %1250 = vst [vmem:[%s1227] ss:$9 sm:$0xff] %v1170
        %v1251 = vld [vmem:[#allocation1] sm:$0xff]
        %v1255 = vsel %vm665, %v1204, 0
        %v1257 = vsel %vm665, %v1209, 0
        %1259 = vmatpush.bf16.msra.mxu0 0
        %1260 = vmatpush.bf16.msra.mxu0 0
        %1261 = vmatpush.bf16.msra.mxu0 0
        %1262 = vmatpush.bf16.msra.mxu0 0
        %1263 = vmatpush.bf16.msra.mxu0 0
        %1264 = vmatpush.bf16.msra.mxu0 0
        %1265 = vmatpush.bf16.msra.mxu0 %v1219
        %1266 = vmatpush.bf16.msra.mxu0 %v1218
        %1267 = vmatmul.bf16.gmra.mxu0 %v1255
        %v1268 = vpop.f32.mrf.mxu0
        %v1269 = vadd.f32 %v1237, %v1268
        %v1270 = vpop.f32.mrf.mxu0
        %v1271 = vadd.f32 %v1246, %v1270
        %1272 = vmatmul.bf16.gmra.mxu0 %v1257
        %v1273 = vpop.f32.mrf.mxu0
        %v1274 = vadd.f32 %v1251, %v1273
        %v1275 = vpop.f32.mrf.mxu0
        %1276 = vdwg.mxu0
        %v1280 = vrot.slane %v1269, 1
        %v1281 = vrot.slane %v1269, 2
        %v1282 = vrot.slane %v1269, 3
        %v1283 = vrot.slane %v1269, 4
        %v1284 = vrot.slane %v1269, 5
        %v1285 = vrot.slane %v1269, 6
        %v1286 = vrot.slane %v1269, 7
        %v1287 = vrot.slane %v1271, 1
        %v1288 = vrot.slane %v1271, 2
        %v1289 = vrot.slane %v1271, 3
        %v1290 = vrot.slane %v1271, 4
        %v1291 = vrot.slane %v1271, 5
        %v1292 = vrot.slane %v1271, 6
        %v1293 = vrot.slane %v1271, 7
        %v1294 = vrot.slane %v1274, 1
        %v1295 = vrot.slane %v1274, 2
        %v1296 = vrot.slane %v1274, 3
        %v1315 = vperm.slane %v986, 0
        %v1317 = vld [vmem:[#allocation2] sm:$0x1]
        %v1319 = vperm.slane %v1317, 0
        %v1321 = vpack.c.bf16 %v1319, %v1319
        %v1324 = vunpack.c.l.b16 %v983
        %v1325 = vunpack.c.l.b16 %v984
        %v1326 = vpack.c.b16 %v1325, %v1324
        %vm1328 = vcmask 130048
        %v1330 = vsel %vm1328, %v1321, 0
        %1332 = vmatpush.bf16.msra.mxu0 0
        %1333 = vmatpush.bf16.msra.mxu0 0
        %1334 = vmatpush.bf16.msra.mxu0 0
        %1335 = vmatpush.bf16.msra.mxu0 0
        %1336 = vmatpush.bf16.msra.mxu0 0
        %1337 = vmatpush.bf16.msra.mxu0 0
        %1338 = vmatpush.bf16.msra.mxu0 0
        %1339 = vmatpush.bf16.msra.mxu0 %v1326
        %1340 = vmatmul.bf16.gmra.mxu0 %v1330
        %v1341 = vpop.f32.mrf.mxu0
        %v1342 = vadd.f32 %v1315, %v1341
        %v1343 = vpop.f32.mrf.mxu0
        %1344 = vdwg.mxu0
        %v1346 = vrot.slane %v1342, 1
        %v1347 = vrot.slane %v1342, 2
        %v1348 = vrot.slane %v1342, 3
        %v1352 = vadd.f32 %v1269, %v1342
        %v1353 = vadd.f32 %v1284, %v1346
        %v1354 = vadd.f32 %v1288, %v1347
        %v1355 = vadd.f32 %v1293, %v1348
        %v1356 = vxor.u32 %v1352, 2147483648
        %v1357 = vxor.u32 %v1353, 2147483648
        %v1358 = vxor.u32 %v1354, 2147483648
        %v1359 = vxor.u32 %v1355, 2147483648
        %v1360 = vmul.f32 %v1356, 1.442695
        %v1361 = vpow.pop %v1360
        %v1362 = vmul.f32 %v1357, 1.442695
        %v1363 = vpow.pop %v1362
        %v1364 = vmul.f32 %v1358, 1.442695
        %v1365 = vpow.pop %v1364
        %v1366 = vmul.f32 %v1359, 1.442695
        %v1367 = vpow.pop %v1366
        %v1368 = vadd.f32 %v1361, 1.0
        %v1369 = vadd.f32 %v1363, 1.0
        %v1370 = vadd.f32 %v1365, 1.0
        %v1371 = vadd.f32 %v1367, 1.0
        %v1372 = vrcp.pop %v1368
        %v1373 = vmul.f32 %v1368, %v1372
        %v1374 = vsub.f32 1.0, %v1373
        %v1375 = vmul.f32 %v1372, %v1374
        %v1376 = vadd.f32 %v1372, %v1375
        %vm1377 = vweird.f32 %v1368
        %vm1378 = vweird.f32 %v1372
        %vm1379 = vmor %vm1377, %vm1378
        %v1380 = vsel %vm1379, %v1372, %v1376
        %v1381 = vand.u32 2147483647, %v1368
        %vm1382 = vcmp.eq.f32.partialorder %v1381, 8.507059e+37
        %v1383 = vand.u32 %v1368, 2147483648
        %v1384 = vor.u32 1.1754944e-38, %v1383
        %v1385 = vsel %vm1382, %v1384, %v1380
        %v1386 = vmul.f32 1.0, %v1385
        %v1387 = vrcp.pop %v1369
        %v1388 = vmul.f32 %v1369, %v1387
        %v1389 = vsub.f32 1.0, %v1388
        %v1390 = vmul.f32 %v1387, %v1389
        %v1391 = vadd.f32 %v1387, %v1390
        %vm1392 = vweird.f32 %v1369
        %vm1393 = vweird.f32 %v1387
        %vm1394 = vmor %vm1392, %vm1393
        %v1395 = vsel %vm1394, %v1387, %v1391
        %v1396 = vand.u32 2147483647, %v1369
        %vm1397 = vcmp.eq.f32.partialorder %v1396, 8.507059e+37
        %v1398 = vand.u32 %v1369, 2147483648
        %v1399 = vor.u32 1.1754944e-38, %v1398
        %v1400 = vsel %vm1397, %v1399, %v1395
        %v1401 = vmul.f32 1.0, %v1400
        %v1402 = vrcp.pop %v1370
        %v1403 = vmul.f32 %v1370, %v1402
        %v1404 = vsub.f32 1.0, %v1403
        %v1405 = vmul.f32 %v1402, %v1404
        %v1406 = vadd.f32 %v1402, %v1405
        %vm1407 = vweird.f32 %v1370
        %vm1408 = vweird.f32 %v1402
        %vm1409 = vmor %vm1407, %vm1408
        %v1410 = vsel %vm1409, %v1402, %v1406
        %v1411 = vand.u32 2147483647, %v1370
        %vm1412 = vcmp.eq.f32.partialorder %v1411, 8.507059e+37
        %v1413 = vand.u32 %v1370, 2147483648
        %v1414 = vor.u32 1.1754944e-38, %v1413
        %v1415 = vsel %vm1412, %v1414, %v1410
        %v1416 = vmul.f32 1.0, %v1415
        %v1417 = vrcp.pop %v1371
        %v1418 = vmul.f32 %v1371, %v1417
        %v1419 = vsub.f32 1.0, %v1418
        %v1420 = vmul.f32 %v1417, %v1419
        %v1421 = vadd.f32 %v1417, %v1420
        %vm1422 = vweird.f32 %v1371
        %vm1423 = vweird.f32 %v1417
        %vm1424 = vmor %vm1422, %vm1423
        %v1425 = vsel %vm1424, %v1417, %v1421
        %v1426 = vand.u32 2147483647, %v1371
        %vm1427 = vcmp.eq.f32.partialorder %v1426, 8.507059e+37
        %v1428 = vand.u32 %v1371, 2147483648
        %v1429 = vor.u32 1.1754944e-38, %v1428
        %v1430 = vsel %vm1427, %v1429, %v1425
        %v1431 = vmul.f32 1.0, %v1430
        %1432 = vrot.lane.b32.xlu0 %v1342, 96
        %v1433 = vpop.permute.xlu0 %1432
        %1434 = vrot.lane.b32.xlu0 %v1346, 96
        %v1435 = vpop.permute.xlu0 %1434
        %1436 = vrot.lane.b32.xlu0 %v1347, 96
        %v1437 = vpop.permute.xlu0 %1436
        %1438 = vrot.lane.b32.xlu0 %v1348, 96
        %v1439 = vpop.permute.xlu0 %1438
        %v1444 = vmul.f32 %v1386, %v1433
        %v1445 = vmul.f32 %v1401, %v1435
        %v1446 = vmul.f32 %v1416, %v1437
        %v1447 = vmul.f32 %v1431, %v1439
        %1452 = vrot.lane.b32.xlu0 %v1444, 32
        %v1453 = vpop.permute.xlu0 %1452
        %1454 = vrot.lane.b32.xlu0 %v1445, 32
        %v1455 = vpop.permute.xlu0 %1454
        %1456 = vrot.lane.b32.xlu0 %v1446, 32
        %v1457 = vpop.permute.xlu0 %1456
        %1458 = vrot.lane.b32.xlu0 %v1447, 32
        %v1459 = vpop.permute.xlu0 %1458
        %v1464 = vadd.f32 %v1269, %v1453
        %v1465 = vadd.f32 %v1284, %v1455
        %v1466 = vadd.f32 %v1288, %v1457
        %v1467 = vadd.f32 %v1293, %v1459
        %v1468 = vtanh.pop %v1464
        %v1469 = vtanh.pop %v1465
        %v1470 = vtanh.pop %v1466
        %v1471 = vtanh.pop %v1467
        %v1472 = vsub.f32 1.0, %v1386
        %v1473 = vsub.f32 1.0, %v1401
        %v1474 = vsub.f32 1.0, %v1416
        %v1475 = vsub.f32 1.0, %v1431
        %1480 = vrot.lane.b32.xlu0 %v1468, 112
        %v1481 = vpop.permute.xlu0 %1480
        %1482 = vrot.lane.b32.xlu0 %v1469, 112
        %v1483 = vpop.permute.xlu0 %1482
        %1484 = vrot.lane.b32.xlu0 %v1470, 112
        %v1485 = vpop.permute.xlu0 %1484
        %1486 = vrot.lane.b32.xlu0 %v1471, 112
        %v1487 = vpop.permute.xlu0 %1486
        %v1492 = vmul.f32 %v1472, %v1481
        %v1493 = vmul.f32 %v1473, %v1483
        %v1494 = vmul.f32 %v1474, %v1485
        %v1495 = vmul.f32 %v1475, %v1487
        %v1496 = vrot.slane %v1319, 1
        %v1497 = vrot.slane %v1319, 2
        %v1498 = vrot.slane %v1319, 3
        %1499 = vrot.lane.b32.xlu0 %v1319, 16
        %v1500 = vpop.permute.xlu0 %1499
        %1501 = vrot.lane.b32.xlu0 %v1496, 16
        %v1502 = vpop.permute.xlu0 %1501
        %1503 = vrot.lane.b32.xlu0 %v1497, 16
        %v1504 = vpop.permute.xlu0 %1503
        %1505 = vrot.lane.b32.xlu0 %v1498, 16
        %v1506 = vpop.permute.xlu0 %1505
        %v1511 = vmul.f32 %v1386, %v1500
        %v1512 = vmul.f32 %v1401, %v1502
        %v1513 = vmul.f32 %v1416, %v1504
        %v1514 = vmul.f32 %v1431, %v1506
        %v1515 = vadd.f32 %v1492, %v1511
        %v1516 = vadd.f32 %v1493, %v1512
        %v1517 = vadd.f32 %v1494, %v1513
        %v1518 = vadd.f32 %v1495, %v1514
        %vm1519 = vcmp.gt.f32.partialorder %v1082, 0.0
        %vm1520 = vcmp.gt.f32.partialorder %v1085, 0.0
        %vm1521 = vcmp.gt.f32.partialorder %v1088, 0.0
        %vm1522 = vcmp.gt.f32.partialorder %v1091, 0.0
        %v1523 = vsel %vm1519, 1, 0
        %v1524 = vsel %vm1520, 1, 0
        %v1525 = vsel %vm1521, 1, 0
        %v1526 = vsel %vm1522, 1, 0
        %v1527 = vperm.slane %v1523, 0
        %v1528 = vperm.slane %v1524, 0
        %v1529 = vperm.slane %v1525, 0
        %v1530 = vperm.slane %v1526, 0
        %vm1531 = vcmp.eq.s32.totalorder %v1527, 1
        %vm1532 = vcmp.eq.s32.totalorder %v1528, 1
        %vm1533 = vcmp.eq.s32.totalorder %v1529, 1
        %vm1534 = vcmp.eq.s32.totalorder %v1530, 1
        %v1535 = vsel %vm1531, %v1515, %v1500
        %v1536 = vsel %vm1532, %v1516, %v1502
        %v1537 = vsel %vm1533, %v1517, %v1504
        %v1538 = vsel %vm1534, %v1518, %v1506
        %v1539 = vpack.c.bf16 %v1535, %v1535
        %v1540 = vpack.c.bf16 %v1536, %v1536
        %v1541 = vpack.c.bf16 %v1537, %v1537
        %v1542 = vpack.c.bf16 %v1538, %v1538
        %v1547 = vunpack.c.l.b16 %v1539
        %v1548 = vunpack.c.l.b16 %v1540
        %v1549 = vunpack.c.l.b16 %v1541
        %v1550 = vunpack.c.l.b16 %v1542
        %v1551 = vrot.slane %v1548, 7
        %v1552 = vsel %vm746, %v1551, %v1547
        %v1553 = vrot.slane %v1549, 6
        %v1554 = vsel %vm747, %v1553, %v1552
        %v1555 = vrot.slane %v1550, 5
        %v1556 = vsel %vm749, %v1555, %v1554
        %v1557 = vpack.c.b16 %v1556, %v1556
        %1558 = vrot.lane.b32.xlu0 %v1557, 112
        %v1559 = vpop.permute.xlu0 %1558
        %v1561 = vsel %vm1328, %v1559, 0
        %1563 = vmatpush.bf16.msra.mxu0 0
        %1564 = vmatpush.bf16.msra.mxu0 0
        %1565 = vmatpush.bf16.msra.mxu0 0
        %1566 = vmatpush.bf16.msra.mxu0 0
        %1567 = vmatpush.bf16.msra.mxu0 0
        %1568 = vmatpush.bf16.msra.mxu0 0
        %1569 = vmatpush.bf16.msra.mxu0 0
        %1570 = vmatpush.bf16.msra.mxu0 %v1326
        %1571 = vmatmul.bf16.gmra.mxu0 %v1561
        %v1572 = vpop.f32.mrf.mxu0
        %v1573 = vadd.f32 %v1315, %v1572
        %v1574 = vpop.f32.mrf.mxu0
        %1575 = vdwg.mxu0
        %v1577 = vrot.slane %v1573, 1
        %v1578 = vrot.slane %v1573, 2
        %v1579 = vrot.slane %v1573, 3
        %v1583 = vadd.f32 %v1280, %v1573
        %v1584 = vadd.f32 %v1285, %v1577
        %v1585 = vadd.f32 %v1289, %v1578
        %v1586 = vadd.f32 %v1274, %v1579
        %v1587 = vxor.u32 %v1583, 2147483648
        %v1588 = vxor.u32 %v1584, 2147483648
        %v1589 = vxor.u32 %v1585, 2147483648
        %v1590 = vxor.u32 %v1586, 2147483648
        %v1591 = vmul.f32 %v1587, 1.442695
        %v1592 = vpow.pop %v1591
        %v1593 = vmul.f32 %v1588, 1.442695
        %v1594 = vpow.pop %v1593
        %v1595 = vmul.f32 %v1589, 1.442695
        %v1596 = vpow.pop %v1595
        %v1597 = vmul.f32 %v1590, 1.442695
        %v1598 = vpow.pop %v1597
        %v1599 = vadd.f32 %v1592, 1.0
        %v1600 = vadd.f32 %v1594, 1.0
        %v1601 = vadd.f32 %v1596, 1.0
        %v1602 = vadd.f32 %v1598, 1.0
        %v1603 = vrcp.pop %v1599
        %v1604 = vmul.f32 %v1599, %v1603
        %v1605 = vsub.f32 1.0, %v1604
        %v1606 = vmul.f32 %v1603, %v1605
        %v1607 = vadd.f32 %v1603, %v1606
        %vm1608 = vweird.f32 %v1599
        %vm1609 = vweird.f32 %v1603
        %vm1610 = vmor %vm1608, %vm1609
        %v1611 = vsel %vm1610, %v1603, %v1607
        %v1612 = vand.u32 2147483647, %v1599
        %vm1613 = vcmp.eq.f32.partialorder %v1612, 8.507059e+37
        %v1614 = vand.u32 %v1599, 2147483648
        %v1615 = vor.u32 1.1754944e-38, %v1614
        %v1616 = vsel %vm1613, %v1615, %v1611
        %v1617 = vmul.f32 1.0, %v1616
        %v1618 = vrcp.pop %v1600
        %v1619 = vmul.f32 %v1600, %v1618
        %v1620 = vsub.f32 1.0, %v1619
        %v1621 = vmul.f32 %v1618, %v1620
        %v1622 = vadd.f32 %v1618, %v1621
        %vm1623 = vweird.f32 %v1600
        %vm1624 = vweird.f32 %v1618
        %vm1625 = vmor %vm1623, %vm1624
        %v1626 = vsel %vm1625, %v1618, %v1622
        %v1627 = vand.u32 2147483647, %v1600
        %vm1628 = vcmp.eq.f32.partialorder %v1627, 8.507059e+37
        %v1629 = vand.u32 %v1600, 2147483648
        %v1630 = vor.u32 1.1754944e-38, %v1629
        %v1631 = vsel %vm1628, %v1630, %v1626
        %v1632 = vmul.f32 1.0, %v1631
        %v1633 = vrcp.pop %v1601
        %v1634 = vmul.f32 %v1601, %v1633
        %v1635 = vsub.f32 1.0, %v1634
        %v1636 = vmul.f32 %v1633, %v1635
        %v1637 = vadd.f32 %v1633, %v1636
        %vm1638 = vweird.f32 %v1601
        %vm1639 = vweird.f32 %v1633
        %vm1640 = vmor %vm1638, %vm1639
        %v1641 = vsel %vm1640, %v1633, %v1637
        %v1642 = vand.u32 2147483647, %v1601
        %vm1643 = vcmp.eq.f32.partialorder %v1642, 8.507059e+37
        %v1644 = vand.u32 %v1601, 2147483648
        %v1645 = vor.u32 1.1754944e-38, %v1644
        %v1646 = vsel %vm1643, %v1645, %v1641
        %v1647 = vmul.f32 1.0, %v1646
        %v1648 = vrcp.pop %v1602
        %v1649 = vmul.f32 %v1602, %v1648
        %v1650 = vsub.f32 1.0, %v1649
        %v1651 = vmul.f32 %v1648, %v1650
        %v1652 = vadd.f32 %v1648, %v1651
        %vm1653 = vweird.f32 %v1602
        %vm1654 = vweird.f32 %v1648
        %vm1655 = vmor %vm1653, %vm1654
        %v1656 = vsel %vm1655, %v1648, %v1652
        %v1657 = vand.u32 2147483647, %v1602
        %vm1658 = vcmp.eq.f32.partialorder %v1657, 8.507059e+37
        %v1659 = vand.u32 %v1602, 2147483648
        %v1660 = vor.u32 1.1754944e-38, %v1659
        %v1661 = vsel %vm1658, %v1660, %v1656
        %v1662 = vmul.f32 1.0, %v1661
        %1663 = vrot.lane.b32.xlu0 %v1573, 96
        %v1664 = vpop.permute.xlu0 %1663
        %1665 = vrot.lane.b32.xlu0 %v1577, 96
        %v1666 = vpop.permute.xlu0 %1665
        %1667 = vrot.lane.b32.xlu0 %v1578, 96
        %v1668 = vpop.permute.xlu0 %1667
        %1669 = vrot.lane.b32.xlu0 %v1579, 96
        %v1670 = vpop.permute.xlu0 %1669
        %v1675 = vmul.f32 %v1617, %v1664
        %v1676 = vmul.f32 %v1632, %v1666
        %v1677 = vmul.f32 %v1647, %v1668
        %v1678 = vmul.f32 %v1662, %v1670
        %1683 = vrot.lane.b32.xlu0 %v1675, 32
        %v1684 = vpop.permute.xlu0 %1683
        %1685 = vrot.lane.b32.xlu0 %v1676, 32
        %v1686 = vpop.permute.xlu0 %1685
        %1687 = vrot.lane.b32.xlu0 %v1677, 32
        %v1688 = vpop.permute.xlu0 %1687
        %1689 = vrot.lane.b32.xlu0 %v1678, 32
        %v1690 = vpop.permute.xlu0 %1689
        %v1695 = vadd.f32 %v1280, %v1684
        %v1696 = vadd.f32 %v1285, %v1686
        %v1697 = vadd.f32 %v1289, %v1688
        %v1698 = vadd.f32 %v1274, %v1690
        %v1699 = vtanh.pop %v1695
        %v1700 = vtanh.pop %v1696
        %v1701 = vtanh.pop %v1697
        %v1702 = vtanh.pop %v1698
        %v1703 = vsub.f32 1.0, %v1617
        %v1704 = vsub.f32 1.0, %v1632
        %v1705 = vsub.f32 1.0, %v1647
        %v1706 = vsub.f32 1.0, %v1662
        %1711 = vrot.lane.b32.xlu0 %v1699, 112
        %v1712 = vpop.permute.xlu0 %1711
        %1713 = vrot.lane.b32.xlu0 %v1700, 112
        %v1714 = vpop.permute.xlu0 %1713
        %1715 = vrot.lane.b32.xlu0 %v1701, 112
        %v1716 = vpop.permute.xlu0 %1715
        %1717 = vrot.lane.b32.xlu0 %v1702, 112
        %v1718 = vpop.permute.xlu0 %1717
        %v1723 = vmul.f32 %v1703, %v1712
        %v1724 = vmul.f32 %v1704, %v1714
        %v1725 = vmul.f32 %v1705, %v1716
        %v1726 = vmul.f32 %v1706, %v1718
        %v1727 = vmul.f32 %v1617, %v1535
        %v1728 = vmul.f32 %v1632, %v1536
        %v1729 = vmul.f32 %v1647, %v1537
        %v1730 = vmul.f32 %v1662, %v1538
        %v1731 = vadd.f32 %v1723, %v1727
        %v1732 = vadd.f32 %v1724, %v1728
        %v1733 = vadd.f32 %v1725, %v1729
        %v1734 = vadd.f32 %v1726, %v1730
        %v1735 = vperm.slane %v1523, 1
        %v1736 = vperm.slane %v1524, 1
        %v1737 = vperm.slane %v1525, 1
        %v1738 = vperm.slane %v1526, 1
        %vm1739 = vcmp.eq.s32.totalorder %v1735, 1
        %vm1740 = vcmp.eq.s32.totalorder %v1736, 1
        %vm1741 = vcmp.eq.s32.totalorder %v1737, 1
        %vm1742 = vcmp.eq.s32.totalorder %v1738, 1
        %v1743 = vsel %vm1739, %v1731, %v1535
        %v1744 = vsel %vm1740, %v1732, %v1536
        %v1745 = vsel %vm1741, %v1733, %v1537
        %v1746 = vsel %vm1742, %v1734, %v1538
        %v1747 = vpack.c.bf16 %v1743, %v1743
        %v1748 = vpack.c.bf16 %v1744, %v1744
        %v1749 = vpack.c.bf16 %v1745, %v1745
        %v1750 = vpack.c.bf16 %v1746, %v1746
        %v1755 = vunpack.c.l.b16 %v1747
        %v1756 = vunpack.c.l.b16 %v1748
        %v1757 = vunpack.c.l.b16 %v1749
        %v1758 = vunpack.c.l.b16 %v1750
        %v1759 = vrot.slane %v1756, 7
        %v1760 = vsel %vm746, %v1759, %v1755
        %v1761 = vrot.slane %v1757, 6
        %v1762 = vsel %vm747, %v1761, %v1760
        %v1763 = vrot.slane %v1758, 5
        %v1764 = vsel %vm749, %v1763, %v1762
        %v1765 = vpack.c.b16 %v1764, %v1764
        %1766 = vrot.lane.b32.xlu0 %v1765, 112
        %v1767 = vpop.permute.xlu0 %1766
        %v1769 = vsel %vm1328, %v1767, 0
        %1771 = vmatpush.bf16.msra.mxu0 0
        %1772 = vmatpush.bf16.msra.mxu0 0
        %1773 = vmatpush.bf16.msra.mxu0 0
        %1774 = vmatpush.bf16.msra.mxu0 0
        %1775 = vmatpush.bf16.msra.mxu0 0
        %1776 = vmatpush.bf16.msra.mxu0 0
        %1777 = vmatpush.bf16.msra.mxu0 0
        %1778 = vmatpush.bf16.msra.mxu0 %v1326
        %1779 = vmatmul.bf16.gmra.mxu0 %v1769
        %v1780 = vpop.f32.mrf.mxu0
        %v1781 = vadd.f32 %v1315, %v1780
        %v1782 = vpop.f32.mrf.mxu0
        %1783 = vdwg.mxu0
        %v1785 = vrot.slane %v1781, 1
        %v1786 = vrot.slane %v1781, 2
        %v1787 = vrot.slane %v1781, 3
        %v1791 = vadd.f32 %v1281, %v1781
        %v1792 = vadd.f32 %v1286, %v1785
        %v1793 = vadd.f32 %v1290, %v1786
        %v1794 = vadd.f32 %v1294, %v1787
        %v1795 = vxor.u32 %v1791, 2147483648
        %v1796 = vxor.u32 %v1792, 2147483648
        %v1797 = vxor.u32 %v1793, 2147483648
        %v1798 = vxor.u32 %v1794, 2147483648
        %v1799 = vmul.f32 %v1795, 1.442695
        %v1800 = vpow.pop %v1799
        %v1801 = vmul.f32 %v1796, 1.442695
        %v1802 = vpow.pop %v1801
        %v1803 = vmul.f32 %v1797, 1.442695
        %v1804 = vpow.pop %v1803
        %v1805 = vmul.f32 %v1798, 1.442695
        %v1806 = vpow.pop %v1805
        %v1807 = vadd.f32 %v1800, 1.0
        %v1808 = vadd.f32 %v1802, 1.0
        %v1809 = vadd.f32 %v1804, 1.0
        %v1810 = vadd.f32 %v1806, 1.0
        %v1811 = vrcp.pop %v1807
        %v1812 = vmul.f32 %v1807, %v1811
        %v1813 = vsub.f32 1.0, %v1812
        %v1814 = vmul.f32 %v1811, %v1813
        %v1815 = vadd.f32 %v1811, %v1814
        %vm1816 = vweird.f32 %v1807
        %vm1817 = vweird.f32 %v1811
        %vm1818 = vmor %vm1816, %vm1817
        %v1819 = vsel %vm1818, %v1811, %v1815
        %v1820 = vand.u32 2147483647, %v1807
        %vm1821 = vcmp.eq.f32.partialorder %v1820, 8.507059e+37
        %v1822 = vand.u32 %v1807, 2147483648
        %v1823 = vor.u32 1.1754944e-38, %v1822
        %v1824 = vsel %vm1821, %v1823, %v1819
        %v1825 = vmul.f32 1.0, %v1824
        %v1826 = vrcp.pop %v1808
        %v1827 = vmul.f32 %v1808, %v1826
        %v1828 = vsub.f32 1.0, %v1827
        %v1829 = vmul.f32 %v1826, %v1828
        %v1830 = vadd.f32 %v1826, %v1829
        %vm1831 = vweird.f32 %v1808
        %vm1832 = vweird.f32 %v1826
        %vm1833 = vmor %vm1831, %vm1832
        %v1834 = vsel %vm1833, %v1826, %v1830
        %v1835 = vand.u32 2147483647, %v1808
        %vm1836 = vcmp.eq.f32.partialorder %v1835, 8.507059e+37
        %v1837 = vand.u32 %v1808, 2147483648
        %v1838 = vor.u32 1.1754944e-38, %v1837
        %v1839 = vsel %vm1836, %v1838, %v1834
        %v1840 = vmul.f32 1.0, %v1839
        %v1841 = vrcp.pop %v1809
        %v1842 = vmul.f32 %v1809, %v1841
        %v1843 = vsub.f32 1.0, %v1842
        %v1844 = vmul.f32 %v1841, %v1843
        %v1845 = vadd.f32 %v1841, %v1844
        %vm1846 = vweird.f32 %v1809
        %vm1847 = vweird.f32 %v1841
        %vm1848 = vmor %vm1846, %vm1847
        %v1849 = vsel %vm1848, %v1841, %v1845
        %v1850 = vand.u32 2147483647, %v1809
        %vm1851 = vcmp.eq.f32.partialorder %v1850, 8.507059e+37
        %v1852 = vand.u32 %v1809, 2147483648
        %v1853 = vor.u32 1.1754944e-38, %v1852
        %v1854 = vsel %vm1851, %v1853, %v1849
        %v1855 = vmul.f32 1.0, %v1854
        %v1856 = vrcp.pop %v1810
        %v1857 = vmul.f32 %v1810, %v1856
        %v1858 = vsub.f32 1.0, %v1857
        %v1859 = vmul.f32 %v1856, %v1858
        %v1860 = vadd.f32 %v1856, %v1859
        %vm1861 = vweird.f32 %v1810
        %vm1862 = vweird.f32 %v1856
        %vm1863 = vmor %vm1861, %vm1862
        %v1864 = vsel %vm1863, %v1856, %v1860
        %v1865 = vand.u32 2147483647, %v1810
        %vm1866 = vcmp.eq.f32.partialorder %v1865, 8.507059e+37
        %v1867 = vand.u32 %v1810, 2147483648
        %v1868 = vor.u32 1.1754944e-38, %v1867
        %v1869 = vsel %vm1866, %v1868, %v1864
        %v1870 = vmul.f32 1.0, %v1869
        %1871 = vrot.lane.b32.xlu0 %v1781, 96
        %v1872 = vpop.permute.xlu0 %1871
        %1873 = vrot.lane.b32.xlu0 %v1785, 96
        %v1874 = vpop.permute.xlu0 %1873
        %1875 = vrot.lane.b32.xlu0 %v1786, 96
        %v1876 = vpop.permute.xlu0 %1875
        %1877 = vrot.lane.b32.xlu0 %v1787, 96
        %v1878 = vpop.permute.xlu0 %1877
        %v1883 = vmul.f32 %v1825, %v1872
        %v1884 = vmul.f32 %v1840, %v1874
        %v1885 = vmul.f32 %v1855, %v1876
        %v1886 = vmul.f32 %v1870, %v1878
        %1891 = vrot.lane.b32.xlu0 %v1883, 32
        %v1892 = vpop.permute.xlu0 %1891
        %1893 = vrot.lane.b32.xlu0 %v1884, 32
        %v1894 = vpop.permute.xlu0 %1893
        %1895 = vrot.lane.b32.xlu0 %v1885, 32
        %v1896 = vpop.permute.xlu0 %1895
        %1897 = vrot.lane.b32.xlu0 %v1886, 32
        %v1898 = vpop.permute.xlu0 %1897
        %v1903 = vadd.f32 %v1281, %v1892
        %v1904 = vadd.f32 %v1286, %v1894
        %v1905 = vadd.f32 %v1290, %v1896
        %v1906 = vadd.f32 %v1294, %v1898
        %v1907 = vtanh.pop %v1903
        %v1908 = vtanh.pop %v1904
        %v1909 = vtanh.pop %v1905
        %v1910 = vtanh.pop %v1906
        %v1911 = vsub.f32 1.0, %v1825
        %v1912 = vsub.f32 1.0, %v1840
        %v1913 = vsub.f32 1.0, %v1855
        %v1914 = vsub.f32 1.0, %v1870
        %1919 = vrot.lane.b32.xlu0 %v1907, 112
        %v1920 = vpop.permute.xlu0 %1919
        %1921 = vrot.lane.b32.xlu0 %v1908, 112
        %v1922 = vpop.permute.xlu0 %1921
        %1923 = vrot.lane.b32.xlu0 %v1909, 112
        %v1924 = vpop.permute.xlu0 %1923
        %1925 = vrot.lane.b32.xlu0 %v1910, 112
        %v1926 = vpop.permute.xlu0 %1925
        %v1931 = vmul.f32 %v1911, %v1920
        %v1932 = vmul.f32 %v1912, %v1922
        %v1933 = vmul.f32 %v1913, %v1924
        %v1934 = vmul.f32 %v1914, %v1926
        %v1935 = vmul.f32 %v1825, %v1743
        %v1936 = vmul.f32 %v1840, %v1744
        %v1937 = vmul.f32 %v1855, %v1745
        %v1938 = vmul.f32 %v1870, %v1746
        %v1939 = vadd.f32 %v1931, %v1935
        %v1940 = vadd.f32 %v1932, %v1936
        %v1941 = vadd.f32 %v1933, %v1937
        %v1942 = vadd.f32 %v1934, %v1938
        %v1943 = vperm.slane %v1523, 2
        %v1944 = vperm.slane %v1524, 2
        %v1945 = vperm.slane %v1525, 2
        %v1946 = vperm.slane %v1526, 2
        %vm1947 = vcmp.eq.s32.totalorder %v1943, 1
        %vm1948 = vcmp.eq.s32.totalorder %v1944, 1
        %vm1949 = vcmp.eq.s32.totalorder %v1945, 1
        %vm1950 = vcmp.eq.s32.totalorder %v1946, 1
        %v1951 = vsel %vm1947, %v1939, %v1743
        %v1952 = vsel %vm1948, %v1940, %v1744
        %v1953 = vsel %vm1949, %v1941, %v1745
        %v1954 = vsel %vm1950, %v1942, %v1746
        %v1955 = vpack.c.bf16 %v1951, %v1951
        %v1956 = vpack.c.bf16 %v1952, %v1952
        %v1957 = vpack.c.bf16 %v1953, %v1953
        %v1958 = vpack.c.bf16 %v1954, %v1954
        %v1963 = vunpack.c.l.b16 %v1955
        %v1964 = vunpack.c.l.b16 %v1956
        %v1965 = vunpack.c.l.b16 %v1957
        %v1966 = vunpack.c.l.b16 %v1958
        %v1967 = vrot.slane %v1964, 7
        %v1968 = vsel %vm746, %v1967, %v1963
        %v1969 = vrot.slane %v1965, 6
        %v1970 = vsel %vm747, %v1969, %v1968
        %v1971 = vrot.slane %v1966, 5
        %v1972 = vsel %vm749, %v1971, %v1970
        %v1973 = vpack.c.b16 %v1972, %v1972
        %1974 = vrot.lane.b32.xlu0 %v1973, 112
        %v1975 = vpop.permute.xlu0 %1974
        %v1977 = vsel %vm1328, %v1975, 0
        %1979 = vmatpush.bf16.msra.mxu0 0
        %1980 = vmatpush.bf16.msra.mxu0 0
        %1981 = vmatpush.bf16.msra.mxu0 0
        %1982 = vmatpush.bf16.msra.mxu0 0
        %1983 = vmatpush.bf16.msra.mxu0 0
        %1984 = vmatpush.bf16.msra.mxu0 0
        %1985 = vmatpush.bf16.msra.mxu0 0
        %1986 = vmatpush.bf16.msra.mxu0 %v1326
        %1987 = vmatmul.bf16.gmra.mxu0 %v1977
        %v1988 = vpop.f32.mrf.mxu0
        %v1989 = vadd.f32 %v1315, %v1988
        %v1990 = vpop.f32.mrf.mxu0
        %1991 = vdwg.mxu0
        %v1993 = vrot.slane %v1989, 1
        %v1994 = vrot.slane %v1989, 2
        %v1995 = vrot.slane %v1989, 3
        %v1999 = vadd.f32 %v1282, %v1989
        %v2000 = vadd.f32 %v1271, %v1993
        %v2001 = vadd.f32 %v1291, %v1994
        %v2002 = vadd.f32 %v1295, %v1995
        %v2003 = vxor.u32 %v1999, 2147483648
        %v2004 = vxor.u32 %v2000, 2147483648
        %v2005 = vxor.u32 %v2001, 2147483648
        %v2006 = vxor.u32 %v2002, 2147483648
        %v2007 = vmul.f32 %v2003, 1.442695
        %v2008 = vpow.pop %v2007
        %v2009 = vmul.f32 %v2004, 1.442695
        %v2010 = vpow.pop %v2009
        %v2011 = vmul.f32 %v2005, 1.442695
        %v2012 = vpow.pop %v2011
        %v2013 = vmul.f32 %v2006, 1.442695
        %v2014 = vpow.pop %v2013
        %v2015 = vadd.f32 %v2008, 1.0
        %v2016 = vadd.f32 %v2010, 1.0
        %v2017 = vadd.f32 %v2012, 1.0
        %v2018 = vadd.f32 %v2014, 1.0
        %v2019 = vrcp.pop %v2015
        %v2020 = vmul.f32 %v2015, %v2019
        %v2021 = vsub.f32 1.0, %v2020
        %v2022 = vmul.f32 %v2019, %v2021
        %v2023 = vadd.f32 %v2019, %v2022
        %vm2024 = vweird.f32 %v2015
        %vm2025 = vweird.f32 %v2019
        %vm2026 = vmor %vm2024, %vm2025
        %v2027 = vsel %vm2026, %v2019, %v2023
        %v2028 = vand.u32 2147483647, %v2015
        %vm2029 = vcmp.eq.f32.partialorder %v2028, 8.507059e+37
        %v2030 = vand.u32 %v2015, 2147483648
        %v2031 = vor.u32 1.1754944e-38, %v2030
        %v2032 = vsel %vm2029, %v2031, %v2027
        %v2033 = vmul.f32 1.0, %v2032
        %v2034 = vrcp.pop %v2016
        %v2035 = vmul.f32 %v2016, %v2034
        %v2036 = vsub.f32 1.0, %v2035
        %v2037 = vmul.f32 %v2034, %v2036
        %v2038 = vadd.f32 %v2034, %v2037
        %vm2039 = vweird.f32 %v2016
        %vm2040 = vweird.f32 %v2034
        %vm2041 = vmor %vm2039, %vm2040
        %v2042 = vsel %vm2041, %v2034, %v2038
        %v2043 = vand.u32 2147483647, %v2016
        %vm2044 = vcmp.eq.f32.partialorder %v2043, 8.507059e+37
        %v2045 = vand.u32 %v2016, 2147483648
        %v2046 = vor.u32 1.1754944e-38, %v2045
        %v2047 = vsel %vm2044, %v2046, %v2042
        %v2048 = vmul.f32 1.0, %v2047
        %v2049 = vrcp.pop %v2017
        %v2050 = vmul.f32 %v2017, %v2049
        %v2051 = vsub.f32 1.0, %v2050
        %v2052 = vmul.f32 %v2049, %v2051
        %v2053 = vadd.f32 %v2049, %v2052
        %vm2054 = vweird.f32 %v2017
        %vm2055 = vweird.f32 %v2049
        %vm2056 = vmor %vm2054, %vm2055
        %v2057 = vsel %vm2056, %v2049, %v2053
        %v2058 = vand.u32 2147483647, %v2017
        %vm2059 = vcmp.eq.f32.partialorder %v2058, 8.507059e+37
        %v2060 = vand.u32 %v2017, 2147483648
        %v2061 = vor.u32 1.1754944e-38, %v2060
        %v2062 = vsel %vm2059, %v2061, %v2057
        %v2063 = vmul.f32 1.0, %v2062
        %v2064 = vrcp.pop %v2018
        %v2065 = vmul.f32 %v2018, %v2064
        %v2066 = vsub.f32 1.0, %v2065
        %v2067 = vmul.f32 %v2064, %v2066
        %v2068 = vadd.f32 %v2064, %v2067
        %vm2069 = vweird.f32 %v2018
        %vm2070 = vweird.f32 %v2064
        %vm2071 = vmor %vm2069, %vm2070
        %v2072 = vsel %vm2071, %v2064, %v2068
        %v2073 = vand.u32 2147483647, %v2018
        %vm2074 = vcmp.eq.f32.partialorder %v2073, 8.507059e+37
        %v2075 = vand.u32 %v2018, 2147483648
        %v2076 = vor.u32 1.1754944e-38, %v2075
        %v2077 = vsel %vm2074, %v2076, %v2072
        %v2078 = vmul.f32 1.0, %v2077
        %2079 = vrot.lane.b32.xlu0 %v1989, 96
        %v2080 = vpop.permute.xlu0 %2079
        %2081 = vrot.lane.b32.xlu0 %v1993, 96
        %v2082 = vpop.permute.xlu0 %2081
        %2083 = vrot.lane.b32.xlu0 %v1994, 96
        %v2084 = vpop.permute.xlu0 %2083
        %2085 = vrot.lane.b32.xlu0 %v1995, 96
        %v2086 = vpop.permute.xlu0 %2085
        %v2091 = vmul.f32 %v2033, %v2080
        %v2092 = vmul.f32 %v2048, %v2082
        %v2093 = vmul.f32 %v2063, %v2084
        %v2094 = vmul.f32 %v2078, %v2086
        %2099 = vrot.lane.b32.xlu0 %v2091, 32
        %v2100 = vpop.permute.xlu0 %2099
        %2101 = vrot.lane.b32.xlu0 %v2092, 32
        %v2102 = vpop.permute.xlu0 %2101
        %2103 = vrot.lane.b32.xlu0 %v2093, 32
        %v2104 = vpop.permute.xlu0 %2103
        %2105 = vrot.lane.b32.xlu0 %v2094, 32
        %v2106 = vpop.permute.xlu0 %2105
        %v2111 = vadd.f32 %v1282, %v2100
        %v2112 = vadd.f32 %v1271, %v2102
        %v2113 = vadd.f32 %v1291, %v2104
        %v2114 = vadd.f32 %v1295, %v2106
        %v2115 = vtanh.pop %v2111
        %v2116 = vtanh.pop %v2112
        %v2117 = vtanh.pop %v2113
        %v2118 = vtanh.pop %v2114
        %v2119 = vsub.f32 1.0, %v2033
        %v2120 = vsub.f32 1.0, %v2048
        %v2121 = vsub.f32 1.0, %v2063
        %v2122 = vsub.f32 1.0, %v2078
        %2127 = vrot.lane.b32.xlu0 %v2115, 112
        %v2128 = vpop.permute.xlu0 %2127
        %2129 = vrot.lane.b32.xlu0 %v2116, 112
        %v2130 = vpop.permute.xlu0 %2129
        %2131 = vrot.lane.b32.xlu0 %v2117, 112
        %v2132 = vpop.permute.xlu0 %2131
        %2133 = vrot.lane.b32.xlu0 %v2118, 112
        %v2134 = vpop.permute.xlu0 %2133
        %v2139 = vmul.f32 %v2119, %v2128
        %v2140 = vmul.f32 %v2120, %v2130
        %v2141 = vmul.f32 %v2121, %v2132
        %v2142 = vmul.f32 %v2122, %v2134
        %v2143 = vmul.f32 %v2033, %v1951
        %v2144 = vmul.f32 %v2048, %v1952
        %v2145 = vmul.f32 %v2063, %v1953
        %v2146 = vmul.f32 %v2078, %v1954
        %v2147 = vadd.f32 %v2139, %v2143
        %v2148 = vadd.f32 %v2140, %v2144
        %v2149 = vadd.f32 %v2141, %v2145
        %v2150 = vadd.f32 %v2142, %v2146
        %v2151 = vperm.slane %v1523, 3
        %v2152 = vperm.slane %v1524, 3
        %v2153 = vperm.slane %v1525, 3
        %v2154 = vperm.slane %v1526, 3
        %vm2155 = vcmp.eq.s32.totalorder %v2151, 1
        %vm2156 = vcmp.eq.s32.totalorder %v2152, 1
        %vm2157 = vcmp.eq.s32.totalorder %v2153, 1
        %vm2158 = vcmp.eq.s32.totalorder %v2154, 1
        %v2159 = vsel %vm2155, %v2147, %v1951
        %v2160 = vsel %vm2156, %v2148, %v1952
        %v2161 = vsel %vm2157, %v2149, %v1953
        %v2162 = vsel %vm2158, %v2150, %v1954
        %v2163 = vpack.c.bf16 %v2159, %v2159
        %v2164 = vpack.c.bf16 %v2160, %v2160
        %v2165 = vpack.c.bf16 %v2161, %v2161
        %v2166 = vpack.c.bf16 %v2162, %v2162
        %v2171 = vunpack.c.l.b16 %v2163
        %v2172 = vunpack.c.l.b16 %v2164
        %v2173 = vunpack.c.l.b16 %v2165
        %v2174 = vunpack.c.l.b16 %v2166
        %v2175 = vrot.slane %v2172, 7
        %v2176 = vsel %vm746, %v2175, %v2171
        %v2177 = vrot.slane %v2173, 6
        %v2178 = vsel %vm747, %v2177, %v2176
        %v2179 = vrot.slane %v2174, 5
        %v2180 = vsel %vm749, %v2179, %v2178
        %v2181 = vpack.c.b16 %v2180, %v2180
        %2182 = vrot.lane.b32.xlu0 %v2181, 112
        %v2183 = vpop.permute.xlu0 %2182
        %v2185 = vsel %vm1328, %v2183, 0
        %2187 = vmatpush.bf16.msra.mxu0 0
        %2188 = vmatpush.bf16.msra.mxu0 0
        %2189 = vmatpush.bf16.msra.mxu0 0
        %2190 = vmatpush.bf16.msra.mxu0 0
        %2191 = vmatpush.bf16.msra.mxu0 0
        %2192 = vmatpush.bf16.msra.mxu0 0
        %2193 = vmatpush.bf16.msra.mxu0 0
        %2194 = vmatpush.bf16.msra.mxu0 %v1326
        %2195 = vmatmul.bf16.gmra.mxu0 %v2185
        %v2196 = vpop.f32.mrf.mxu0
        %v2197 = vadd.f32 %v1315, %v2196
        %v2198 = vpop.f32.mrf.mxu0
        %2199 = vdwg.mxu0
        %v2201 = vrot.slane %v2197, 1
        %v2202 = vrot.slane %v2197, 2
        %v2203 = vrot.slane %v2197, 3
        %v2207 = vadd.f32 %v1283, %v2197
        %v2208 = vadd.f32 %v1287, %v2201
        %v2209 = vadd.f32 %v1292, %v2202
        %v2210 = vadd.f32 %v1296, %v2203
        %v2211 = vxor.u32 %v2207, 2147483648
        %v2212 = vxor.u32 %v2208, 2147483648
        %v2213 = vxor.u32 %v2209, 2147483648
        %v2214 = vxor.u32 %v2210, 2147483648
        %v2215 = vmul.f32 %v2211, 1.442695
        %v2216 = vpow.pop %v2215
        %v2217 = vmul.f32 %v2212, 1.442695
        %v2218 = vpow.pop %v2217
        %v2219 = vmul.f32 %v2213, 1.442695
        %v2220 = vpow.pop %v2219
        %v2221 = vmul.f32 %v2214, 1.442695
        %v2222 = vpow.pop %v2221
        %v2223 = vadd.f32 %v2216, 1.0
        %v2224 = vadd.f32 %v2218, 1.0
        %v2225 = vadd.f32 %v2220, 1.0
        %v2226 = vadd.f32 %v2222, 1.0
        %v2227 = vrcp.pop %v2223
        %v2228 = vmul.f32 %v2223, %v2227
        %v2229 = vsub.f32 1.0, %v2228
        %v2230 = vmul.f32 %v2227, %v2229
        %v2231 = vadd.f32 %v2227, %v2230
        %vm2232 = vweird.f32 %v2223
        %vm2233 = vweird.f32 %v2227
        %vm2234 = vmor %vm2232, %vm2233
        %v2235 = vsel %vm2234, %v2227, %v2231
        %v2236 = vand.u32 2147483647, %v2223
        %vm2237 = vcmp.eq.f32.partialorder %v2236, 8.507059e+37
        %v2238 = vand.u32 %v2223, 2147483648
        %v2239 = vor.u32 1.1754944e-38, %v2238
        %v2240 = vsel %vm2237, %v2239, %v2235
        %v2241 = vmul.f32 1.0, %v2240
        %v2242 = vrcp.pop %v2224
        %v2243 = vmul.f32 %v2224, %v2242
        %v2244 = vsub.f32 1.0, %v2243
        %v2245 = vmul.f32 %v2242, %v2244
        %v2246 = vadd.f32 %v2242, %v2245
        %vm2247 = vweird.f32 %v2224
        %vm2248 = vweird.f32 %v2242
        %vm2249 = vmor %vm2247, %vm2248
        %v2250 = vsel %vm2249, %v2242, %v2246
        %v2251 = vand.u32 2147483647, %v2224
        %vm2252 = vcmp.eq.f32.partialorder %v2251, 8.507059e+37
        %v2253 = vand.u32 %v2224, 2147483648
        %v2254 = vor.u32 1.1754944e-38, %v2253
        %v2255 = vsel %vm2252, %v2254, %v2250
        %v2256 = vmul.f32 1.0, %v2255
        %v2257 = vrcp.pop %v2225
        %v2258 = vmul.f32 %v2225, %v2257
        %v2259 = vsub.f32 1.0, %v2258
        %v2260 = vmul.f32 %v2257, %v2259
        %v2261 = vadd.f32 %v2257, %v2260
        %vm2262 = vweird.f32 %v2225
        %vm2263 = vweird.f32 %v2257
        %vm2264 = vmor %vm2262, %vm2263
        %v2265 = vsel %vm2264, %v2257, %v2261
        %v2266 = vand.u32 2147483647, %v2225
        %vm2267 = vcmp.eq.f32.partialorder %v2266, 8.507059e+37
        %v2268 = vand.u32 %v2225, 2147483648
        %v2269 = vor.u32 1.1754944e-38, %v2268
        %v2270 = vsel %vm2267, %v2269, %v2265
        %v2271 = vmul.f32 1.0, %v2270
        %v2272 = vrcp.pop %v2226
        %v2273 = vmul.f32 %v2226, %v2272
        %v2274 = vsub.f32 1.0, %v2273
        %v2275 = vmul.f32 %v2272, %v2274
        %v2276 = vadd.f32 %v2272, %v2275
        %vm2277 = vweird.f32 %v2226
        %vm2278 = vweird.f32 %v2272
        %vm2279 = vmor %vm2277, %vm2278
        %v2280 = vsel %vm2279, %v2272, %v2276
        %v2281 = vand.u32 2147483647, %v2226
        %vm2282 = vcmp.eq.f32.partialorder %v2281, 8.507059e+37
        %v2283 = vand.u32 %v2226, 2147483648
        %v2284 = vor.u32 1.1754944e-38, %v2283
        %v2285 = vsel %vm2282, %v2284, %v2280
        %v2286 = vmul.f32 1.0, %v2285
        %2287 = vrot.lane.b32.xlu0 %v2197, 96
        %v2288 = vpop.permute.xlu0 %2287
        %2289 = vrot.lane.b32.xlu0 %v2201, 96
        %v2290 = vpop.permute.xlu0 %2289
        %2291 = vrot.lane.b32.xlu0 %v2202, 96
        %v2292 = vpop.permute.xlu0 %2291
        %2293 = vrot.lane.b32.xlu0 %v2203, 96
        %v2294 = vpop.permute.xlu0 %2293
        %v2299 = vmul.f32 %v2241, %v2288
        %v2300 = vmul.f32 %v2256, %v2290
        %v2301 = vmul.f32 %v2271, %v2292
        %v2302 = vmul.f32 %v2286, %v2294
        %2307 = vrot.lane.b32.xlu0 %v2299, 32
        %v2308 = vpop.permute.xlu0 %2307
        %2309 = vrot.lane.b32.xlu0 %v2300, 32
        %v2310 = vpop.permute.xlu0 %2309
        %2311 = vrot.lane.b32.xlu0 %v2301, 32
        %v2312 = vpop.permute.xlu0 %2311
        %2313 = vrot.lane.b32.xlu0 %v2302, 32
        %v2314 = vpop.permute.xlu0 %2313
        %v2319 = vadd.f32 %v1283, %v2308
        %v2320 = vadd.f32 %v1287, %v2310
        %v2321 = vadd.f32 %v1292, %v2312
        %v2322 = vadd.f32 %v1296, %v2314
        %v2323 = vtanh.pop %v2319
        %v2324 = vtanh.pop %v2320
        %v2325 = vtanh.pop %v2321
        %v2326 = vtanh.pop %v2322
        %v2327 = vsub.f32 1.0, %v2241
        %v2328 = vsub.f32 1.0, %v2256
        %v2329 = vsub.f32 1.0, %v2271
        %v2330 = vsub.f32 1.0, %v2286
        %2335 = vrot.lane.b32.xlu0 %v2323, 112
        %v2336 = vpop.permute.xlu0 %2335
        %2337 = vrot.lane.b32.xlu0 %v2324, 112
        %v2338 = vpop.permute.xlu0 %2337
        %2339 = vrot.lane.b32.xlu0 %v2325, 112
        %v2340 = vpop.permute.xlu0 %2339
        %2341 = vrot.lane.b32.xlu0 %v2326, 112
        %v2342 = vpop.permute.xlu0 %2341
        %v2347 = vmul.f32 %v2327, %v2336
        %v2348 = vmul.f32 %v2328, %v2338
        %v2349 = vmul.f32 %v2329, %v2340
        %v2350 = vmul.f32 %v2330, %v2342
        %v2351 = vmul.f32 %v2241, %v2159
        %v2352 = vmul.f32 %v2256, %v2160
        %v2353 = vmul.f32 %v2271, %v2161
        %v2354 = vmul.f32 %v2286, %v2162
        %v2355 = vadd.f32 %v2347, %v2351
        %v2356 = vadd.f32 %v2348, %v2352
        %v2357 = vadd.f32 %v2349, %v2353
        %v2358 = vadd.f32 %v2350, %v2354
        %v2359 = vperm.slane %v1523, 4
        %v2360 = vperm.slane %v1524, 4
        %v2361 = vperm.slane %v1525, 4
        %v2362 = vperm.slane %v1526, 4
        %vm2363 = vcmp.eq.s32.totalorder %v2359, 1
        %vm2364 = vcmp.eq.s32.totalorder %v2360, 1
        %vm2365 = vcmp.eq.s32.totalorder %v2361, 1
        %vm2366 = vcmp.eq.s32.totalorder %v2362, 1
        %v2367 = vsel %vm2363, %v2355, %v2159
        %v2368 = vsel %vm2364, %v2356, %v2160
        %v2369 = vsel %vm2365, %v2357, %v2161
        %v2370 = vsel %vm2366, %v2358, %v2162
        %v2371 = vld [vmem:[%s12] sm:$0xf]
        %v2372 = vld [vmem:[%s12 + $0x4] sm:$0xf]
        %v2373 = vld [vmem:[%s12 + $0x8] sm:$0xf]
        %v2374 = vld [vmem:[%s12 + $0xc] sm:$0xf]
        %v2375 = vld [vmem:[%s12 + $0x10] sm:$0xf]
        %v2376 = vld [vmem:[%s12 + $0x14] sm:$0xf]
        %v2377 = vld [vmem:[%s13] sm:$0x1]
        %v2378 = vpack.c.bf16 %v976, %v975
        %v2379 = vpack.c.bf16 %v978, %v977
        %v2384 = vunpack.c.l.b16 %v2371
        %v2385 = vunpack.c.l.b16 %v2372
        %v2386 = vunpack.c.l.b16 %v2373
        %v2387 = vunpack.c.l.b16 %v2374
        %v2388 = vpack.c.b16 %v2385, %v2384
        %v2389 = vpack.c.b16 %v2387, %v2386
        %v2393 = vsel %vm665, %v2378, 0
        %v2396 = vsel %vm665, %v2379, 0
        %2398 = vmatpush.bf16.msra.mxu0 0
        %2399 = vmatpush.bf16.msra.mxu0 0
        %2400 = vmatpush.bf16.msra.mxu0 0
        %2401 = vmatpush.bf16.msra.mxu0 0
        %2402 = vmatpush.bf16.msra.mxu0 0
        %2403 = vmatpush.bf16.msra.mxu0 0
        %2404 = vmatpush.bf16.msra.mxu0 %v2389
        %2405 = vmatpush.bf16.msra.mxu0 %v2388
        %2406 = vmatmul.bf16.gmra.mxu0 %v2393
        %v2407 = vpop.f32.mrf.mxu0
        %v2408 = vadd.f32 0.0, %v2407
        %v2409 = vpop.f32.mrf.mxu0
        %v2410 = vadd.f32 0.0, %v2409
        %2411 = vmatmul.bf16.gmra.mxu0 %v2396
        %v2412 = vpop.f32.mrf.mxu0
        %v2413 = vadd.f32 0.0, %v2412
        %v2414 = vpop.f32.mrf.mxu0
        %v2415 = vadd.f32 0.0, %v2414
        %2416 = vdwg.mxu0
        %v2417 = vpack.c.bf16 %v2367, %v2367
        %v2418 = vpack.c.bf16 %v2368, %v2368
        %v2419 = vpack.c.bf16 %v2369, %v2369
        %v2420 = vpack.c.bf16 %v2370, %v2370
        %v2422 = vperm.slane %v2377, 0
        %v2428 = vunpack.c.l.b16 %v2417
        %v2429 = vunpack.c.l.b16 %v2418
        %v2430 = vunpack.c.l.b16 %v2419
        %v2431 = vunpack.c.l.b16 %v2420
        %v2432 = vrot.slane %v2429, 7
        %v2433 = vsel %vm746, %v2432, %v2428
        %v2434 = vrot.slane %v2430, 6
        %v2435 = vsel %vm747, %v2434, %v2433
        %v2436 = vrot.slane %v2431, 5
        %v2437 = vsel %vm749, %v2436, %v2435
        %v2438 = vpack.c.b16 %v2437, %v2437
        %2439 = vrot.lane.b32.xlu0 %v2438, 112
        %v2440 = vpop.permute.xlu0 %2439
        %v2443 = vunpack.c.l.b16 %v2375
        %v2444 = vunpack.c.l.b16 %v2376
        %v2445 = vpack.c.b16 %v2444, %v2443
        %v2448 = vsel %vm1328, %v2440, 0
        %2450 = vmatpush.bf16.msra.mxu0 0
        %2451 = vmatpush.bf16.msra.mxu0 0
        %2452 = vmatpush.bf16.msra.mxu0 0
        %2453 = vmatpush.bf16.msra.mxu0 0
        %2454 = vmatpush.bf16.msra.mxu0 0
        %2455 = vmatpush.bf16.msra.mxu0 0
        %2456 = vmatpush.bf16.msra.mxu0 0
        %2457 = vmatpush.bf16.msra.mxu0 %v2445
        %2458 = vmatmul.bf16.gmra.mxu0 %v2448
        %v2459 = vpop.f32.mrf.mxu0
        %v2460 = vadd.f32 %v2422, %v2459
        %v2461 = vpop.f32.mrf.mxu0
        %2462 = vdwg.mxu0
        %v2464 = vrot.slane %v2460, 1
        %v2465 = vrot.slane %v2460, 2
        %v2466 = vrot.slane %v2460, 3
        %v2467 = vperm.slane %v2460, 0
        %v2468 = vperm.slane %v2464, 0
        %v2469 = vperm.slane %v2465, 0
        %v2470 = vperm.slane %v2466, 0
        %v2475 = vadd.f32 %v2408, %v2467
        %v2476 = vadd.f32 %v2410, %v2468
        %v2477 = vadd.f32 %v2413, %v2469
        %v2478 = vadd.f32 %v2415, %v2470
        %vm2479 = vcmask 48128
        %2480 = vst.msk [vmem:[%s605] sm:$0xff] %vm2479, %v2475
        %2481 = vst.msk [vmem:[%s605 + $0x8] sm:$0xff] %vm2479, %v2476
        %2482 = vst.msk [vmem:[%s605 + $0x10] sm:$0xff] %vm2479, %v2477
        %2483 = vst.msk [vmem:[%s605 + $0x18] sm:$0xff] %vm2479, %v2478
        %s2484 = smul.u32 4, %s29
        %p2485 = scmp.lt.s32.totalorder %s2484, 7
        %s2486 = scalar_select %p2485, %s2484, 7
        %s2487 = smul.addr %s2486, 8
        %s2488 = scalar_lea.vmem %s14, %s2487
        // Predicated region
        $region101: #{tpu_custom_call.1} parent=75 // pred_check
          %p2489 = pneg %p356
        $region102: #{tpu_custom_call.1} parent=75 // pred_check_branch
          %2491 = sbr.rel (%p2489) target = $region104
        $region103: #{tpu_custom_call.1} parent=75 // pred_region
          %s2492 = smul.u32 4, %s29
        $region104: #{tpu_custom_call.1} parent=75 // pred_fallthru
          _
      $region76: #{tpu_custom_call.1} parent=5 // pred_fallthru
        _
      %p2493 = scmp.le.s32.totalorder 2, %s24
      // Predicated region
      $region105: #{tpu_custom_call.1} parent=5 // pred_check
        %p2494 = pneg %p2493
      $region106: #{tpu_custom_call.1} parent=5 // pred_check_branch
        %2496 = sbr.rel (%p2494) target = $region108
      $region107: #{tpu_custom_call.1} parent=5 // pred_region
        %s2497 = ssub.s32 %s24, 2
        // Predicated region
        $region109: #{tpu_custom_call.1} parent=107 // pred_check
          %p2498 = pneg %p362
        $region110: #{tpu_custom_call.1} parent=107 // pred_check_branch
          %2500 = sbr.rel (%p2498) target = $region112
        $region111: #{tpu_custom_call.1} parent=107 // pred_region
          %s2501 = smul.u32 4, %s30
          %p2502 = scmp.lt.s32.totalorder %s2501, 7
          %s2503 = scalar_select %p2502, %s2501, 7
          %s2504 = smul.addr %s2503, 8
          %s2505 = scalar_lea.vmem %s14, %s2504
        $region112: #{tpu_custom_call.1} parent=107 // pred_fallthru
          _
      $region108: #{tpu_custom_call.1} parent=5 // pred_fallthru
        _
    $region6: #{tpu_custom_call.1} parent=1 // loop_footer
      %s28 = sadd.s32 1, %s24
    $region7: #{tpu_custom_call.1} parent=1 // loop_footer_branch
      %23 = sbr.rel target = $region3
    $region8: #{tpu_custom_call.1} parent=1 // loop_exit
      _
    %2506 = vsyncpa [#allocation3], 1
    %s2507 = scalar_lea.sflag [#allocation3], 1
    %2508 = vsyncpa %s2507, 1
    %2509 = vsyncpa [#allocation5], 1
    %2510 = vsyncpa [#allocation8], 1
    %2511 = vsyncpa [#allocation11], 1

</llo_original>
